<compile_context>
chip_gen: v6e
topology: v6e:2x2x1
jax: 0.10.0
libtpu: 0.0.40
codegen_flags: <defaults>
</compile_context>

<pallas_src>
import jax
import jax.numpy as jnp
from jax.experimental import pallas as pl
from jax.experimental.pallas import tpu as pltpu

BN_EPS = 1e-5


def _make_conv_stats_kernel(H, W, Cin, Cout):
    """Pass 1: 3x3 conv as 9 shifted-slice matmuls in transposed (Cout, M) layout,
    plus accumulation of per-channel sum / sum-of-squares for BatchNorm."""
    M = H * W

    def kernel(x_ref, w_ref, mask_ref, y_ref, s1_ref, s2_ref):
        # x_ref:    (Cin, M + 2*(W+1))  flattened image, (W+1) zero halo on lanes
        # w_ref:    (9, Cout, Cin)      tap-major conv weights
        # mask_ref: (3, M)              column-wrap masks for dj = -1, 0, +1
        # y_ref:    (Cout, M)           conv output for this image (lane-dense)
        # s1_ref, s2_ref: (Cout, 1)     resident per-channel sum / sum-of-squares
        @pl.when(pl.program_id(0) == 0)
        def _init():
            s1_ref[...] = jnp.zeros_like(s1_ref)
            s2_ref[...] = jnp.zeros_like(s2_ref)

        x = x_ref[...]
        acc = jnp.zeros((Cout, M), jnp.float32)
        for di in (-1, 0, 1):
            for dj in (-1, 0, 1):
                t = (di + 1) * 3 + (dj + 1)
                base = (W + 1) + di * W + dj            # static offset, >= 0
                xs = x[:, base:base + M]                # (Cin, M) shifted slice
                if dj != 0:                             # kill row-wrap columns
                    xs = xs * mask_ref[dj + 1:dj + 2, :]
                acc = acc + jnp.dot(w_ref[t], xs,
                                    preferred_element_type=jnp.float32)

        y_ref[...] = acc
        s1_ref[...] += jnp.sum(acc, axis=1, keepdims=True)
        s2_ref[...] += jnp.sum(acc * acc, axis=1, keepdims=True)

    return kernel


def _bn_relu_kernel(y_ref, scale_ref, shift_ref, o_ref):
    # y_ref / o_ref: (Cout, M); scale_ref / shift_ref: (Cout, 1) folded BN affine
    o_ref[...] = jnp.maximum(y_ref[...] * scale_ref[...] + shift_ref[...], 0.0)


def encoder_block(x, conv_w, conv_b, gamma, beta):
    """x: (N, Cin, H, W) f32; conv_w: (Cout, Cin, 3, 3). Returns (N, Cout, H, W).

    conv_b is accepted for interface parity but unused: a per-channel constant
    added before training-mode BatchNorm is cancelled exactly by the batch-mean
    subtraction and does not change the variance.
    """
    del conv_b
    N, Cin, H, W = x.shape
    Cout = conv_w.shape[0]
    M = H * W
    Mp = M + 2 * (W + 1)

    # --- cheap glue: flatten spatial (free reshape) + (W+1) zero halo on lanes ---
    x_pad = jnp.pad(x.reshape(N, Cin, M), ((0, 0), (0, 0), (W + 1, W + 1)))
    # tap-major weights: w3[ki*3 + kj] == conv_w[:, :, ki, kj]  -> (9, Cout, Cin)
    w3 = conv_w.transpose(2, 3, 0, 1).reshape(9, Cout, Cin).astype(jnp.float32)
    # column-wrap masks (dj = -1, 0, +1): zero accesses that wrapped across rows
    col = jnp.arange(M, dtype=jnp.int32) % W
    mask = jnp.stack([(col != 0).astype(jnp.float32),
                      jnp.ones((M,), jnp.float32),
                      (col != W - 1).astype(jnp.float32)], axis=0)

    # --- pass 1: conv + per-channel sum / sum-of-squares (grid over images) ---
    y_t, s1, s2 = pl.pallas_call(
        _make_conv_stats_kernel(H, W, Cin, Cout),
        out_shape=(jax.ShapeDtypeStruct((N, Cout, M), jnp.float32),
                   jax.ShapeDtypeStruct((Cout, 1), jnp.float32),
                   jax.ShapeDtypeStruct((Cout, 1), jnp.float32)),
        grid_spec=pltpu.PrefetchScalarGridSpec(
            num_scalar_prefetch=0,
            grid=(N,),
            in_specs=[
                pl.BlockSpec((None, Cin, Mp), lambda n: (n, 0, 0)),
                pl.BlockSpec((9, Cout, Cin), lambda n: (0, 0, 0)),
                pl.BlockSpec((3, M), lambda n: (0, 0)),
            ],
            out_specs=[
                pl.BlockSpec((None, Cout, M), lambda n: (n, 0, 0)),
                pl.BlockSpec((Cout, 1), lambda n: (0, 0)),
                pl.BlockSpec((Cout, 1), lambda n: (0, 0)),
            ],
        ),
        compiler_params=pltpu.CompilerParams(
            dimension_semantics=("arbitrary",)),   # stats accumulate across grid
    )(x_pad, w3, mask)

    # --- tiny XLA epilogue: fold BN stats into one scale/shift per channel ---
    cnt = jnp.float32(N * M)
    mean = s1 / cnt
    var = s2 / cnt - mean * mean                   # biased (training-mode) variance
    scale = gamma.reshape(Cout, 1).astype(jnp.float32) * jax.lax.rsqrt(var + BN_EPS)
    shift = beta.reshape(Cout, 1).astype(jnp.float32) - mean * scale

    # --- pass 2: y*scale + shift, ReLU (independent per image -> 'parallel') ---
    out_flat = pl.pallas_call(
        _bn_relu_kernel,
        out_shape=jax.ShapeDtypeStruct((N, Cout, M), jnp.float32),
        grid_spec=pltpu.PrefetchScalarGridSpec(
            num_scalar_prefetch=0,
            grid=(N,),
            in_specs=[
                pl.BlockSpec((None, Cout, M), lambda n: (n, 0, 0)),
                pl.BlockSpec((Cout, 1), lambda n: (0, 0)),
                pl.BlockSpec((Cout, 1), lambda n: (0, 0)),
            ],
            out_specs=pl.BlockSpec((None, Cout, M), lambda n: (n, 0, 0)),
        ),
        compiler_params=pltpu.CompilerParams(
            dimension_semantics=("parallel",)),
    )(y_t, scale, shift)

    # NCHW: (N, Cout, H*W) -> (N, Cout, H, W) is a free reshape (no transpose).
    return out_flat.reshape(N, Cout, H, W)


def _reference(x, conv_w, conv_b, gamma, beta):
    y = jax.lax.conv_general_dilated(
        x, conv_w, window_strides=(1, 1), padding=((1, 1), (1, 1)),
        dimension_numbers=("NCHW", "OIHW", "NCHW"))
    y = y + conv_b[None, :, None, None]
    mean = jnp.mean(y, axis=(0, 2, 3), keepdims=True)
    var = jnp.mean((y - mean) ** 2, axis=(0, 2, 3), keepdims=True)
    y_hat = (y - mean) * jax.lax.rsqrt(var + BN_EPS)
    y_hat = y_hat * gamma[None, :, None, None] + beta[None, :, None, None]
    return jnp.maximum(y_hat, 0.0)


if __name__ == "__main__":
    # Small shapes consistent with the module: N=2, Cin=4, H=W=16, Cout=8.
    N, Cin, H, W = 2, 4, 16, 16
    Cout = 8

    key = jax.random.PRNGKey(0)
    kx, kw, kb = jax.random.split(key, 3)

    x = jax.random.normal(kx, (N, Cin, H, W), dtype=jnp.float32)

    fan_in = Cin * 3 * 3
    bound = 1.0 / jnp.sqrt(fan_in)
    conv_w = jax.random.uniform(kw, (Cout, Cin, 3, 3), jnp.float32, -bound, bound)
    conv_b = jax.random.uniform(kb, (Cout,), jnp.float32, -bound, bound)
    gamma = jnp.ones((Cout,), jnp.float32)   # BatchNorm2d default weight
    beta = jnp.zeros((Cout,), jnp.float32)   # BatchNorm2d default bias

    out = jax.jit(encoder_block)(x, conv_w, conv_b, gamma, beta)
    out = jax.block_until_ready(out)

    ref = _reference(x, conv_w, conv_b, gamma, beta)
    assert out.shape == (N, Cout, H, W)
    assert jnp.allclose(out, ref, atol=1e-2, rtol=1e-2), "mismatch vs reference"

    print("KERNEL_OK")
</pallas_src>

<mosaic_0001>
module attributes {stable_mosaic.version = 11 : i64} {
  func.func @kernel(%arg0: i32, %arg1: memref<1x4x290xf32, #tpu.memory_space<vmem>>, %arg2: memref<9x8x4xf32, #tpu.memory_space<vmem>>, %arg3: memref<3x256xf32, #tpu.memory_space<vmem>>, %arg4: memref<1x8x256xf32, #tpu.memory_space<vmem>>, %arg5: memref<8x1xf32, #tpu.memory_space<vmem>>, %arg6: memref<8x1xf32, #tpu.memory_space<vmem>>) attributes {dimension_semantics = [#tpu.dimension_semantics<arbitrary>], iteration_bounds = array<i64: 2>, scalar_prefetch = 0 : i64, scratch_operands = 0 : i64, tpu.core_type = #tpu.core_type<tc>, window_params = [{transform_indices = @transform_0, window_bounds = array<i64: 1, 4, 290>}, {pipeline_mode = #tpu.pipeline_mode<synchronous>, transform_indices = @transform_1, window_bounds = array<i64: 9, 8, 4>}, {pipeline_mode = #tpu.pipeline_mode<synchronous>, transform_indices = @transform_2, window_bounds = array<i64: 3, 256>}, {transform_indices = @transform_3, window_bounds = array<i64: 1, 8, 256>}, {pipeline_mode = #tpu.pipeline_mode<synchronous>, transform_indices = @transform_4, window_bounds = array<i64: 8, 1>}, {pipeline_mode = #tpu.pipeline_mode<synchronous>, transform_indices = @transform_5, window_bounds = array<i64: 8, 1>}]} {
    %c0_i32 = arith.constant 0 : i32
    %0 = arith.cmpi eq, %arg0, %c0_i32 : i32
    %1 = arith.extui %0 : i1 to i32
    %c0_i32_0 = arith.constant 0 : i32
    %2 = arith.cmpi ne, %1, %c0_i32_0 : i32
    scf.if %2 {
      %cst_56 = arith.constant 0.000000e+00 : f32
      %83 = vector.broadcast %cst_56 : f32 to vector<8x1xf32>
      %c0_57 = arith.constant 0 : index
      %c0_58 = arith.constant 0 : index
      %84 = vector.load %arg5[%c0_57, %c0_58] : memref<8x1xf32, #tpu.memory_space<vmem>>, vector<8x1xf32>
      tpu.vector_store %arg5[%c0_57, %c0_58], %83 {strides = array<i32>} : memref<8x1xf32, #tpu.memory_space<vmem>>, vector<8x1xf32>,
      %cst_59 = arith.constant 0.000000e+00 : f32
      %85 = vector.broadcast %cst_59 : f32 to vector<8x1xf32>
      %c0_60 = arith.constant 0 : index
      %c0_61 = arith.constant 0 : index
      %86 = vector.load %arg6[%c0_60, %c0_61] : memref<8x1xf32, #tpu.memory_space<vmem>>, vector<8x1xf32>
      tpu.vector_store %arg6[%c0_60, %c0_61], %85 {strides = array<i32>} : memref<8x1xf32, #tpu.memory_space<vmem>>, vector<8x1xf32>,
    } else {
    }
    %c0 = arith.constant 0 : index
    %c0_1 = arith.constant 0 : index
    %c0_2 = arith.constant 0 : index
    %3 = vector.load %arg1[%c0, %c0_1, %c0_2] : memref<1x4x290xf32, #tpu.memory_space<vmem>>, vector<1x4x290xf32>
    %4 = vector.shape_cast %3 : vector<1x4x290xf32> to vector<4x290xf32>
    %cst = arith.constant 0.000000e+00 : f32
    %5 = vector.broadcast %cst : f32 to vector<8x256xf32>
    %6 = vector.extract_strided_slice %4 {offsets = [0, 0], sizes = [4, 256], strides = [1, 1]} : vector<4x290xf32> to vector<4x256xf32>
    %c0_3 = arith.constant 0 : index
    %c0_4 = arith.constant 0 : index
    %7 = vector.load %arg3[%c0_3, %c0_4] : memref<3x256xf32, #tpu.memory_space<vmem>>, vector<1x256xf32>
    %8 = vector.broadcast %7 : vector<1x256xf32> to vector<4x256xf32>
    %9 = arith.mulf %6, %8 : vector<4x256xf32>
    %c0_5 = arith.constant 0 : index
    %c0_6 = arith.constant 0 : index
    %c0_7 = arith.constant 0 : index
    %10 = vector.load %arg2[%c0_5, %c0_6, %c0_7] : memref<9x8x4xf32, #tpu.memory_space<vmem>>, vector<1x8x4xf32>
    %11 = vector.shape_cast %10 : vector<1x8x4xf32> to vector<8x4xf32>
    %cst_8 = arith.constant dense<0.000000e+00> : vector<8x256xf32>
    %12 = tpu.matmul %11, %9, %cst_8 {dimension_numbers = #tpu.dot_dimension_numbers<[1], [0], [0], [1], [0, 0, 1, 1], [], []>} : vector<8x4xf32>, vector<4x256xf32>, vector<8x256xf32> -> vector<8x256xf32>
    %13 = arith.addf %5, %12 : vector<8x256xf32>
    %14 = vector.extract_strided_slice %4 {offsets = [0, 1], sizes = [4, 256], strides = [1, 1]} : vector<4x290xf32> to vector<4x256xf32>
    %c1 = arith.constant 1 : index
    %c0_9 = arith.constant 0 : index
    %c0_10 = arith.constant 0 : index
    %15 = vector.load %arg2[%c1, %c0_9, %c0_10] : memref<9x8x4xf32, #tpu.memory_space<vmem>>, vector<1x8x4xf32>
    %16 = vector.shape_cast %15 : vector<1x8x4xf32> to vector<8x4xf32>
    %cst_11 = arith.constant dense<0.000000e+00> : vector<8x256xf32>
    %17 = tpu.matmul %16, %14, %cst_11 {dimension_numbers = #tpu.dot_dimension_numbers<[1], [0], [0], [1], [0, 0, 1, 1], [], []>} : vector<8x4xf32>, vector<4x256xf32>, vector<8x256xf32> -> vector<8x256xf32>
    %18 = arith.addf %13, %17 : vector<8x256xf32>
    %19 = vector.extract_strided_slice %4 {offsets = [0, 2], sizes = [4, 256], strides = [1, 1]} : vector<4x290xf32> to vector<4x256xf32>
    %c2 = arith.constant 2 : index
    %c0_12 = arith.constant 0 : index
    %20 = vector.load %arg3[%c2, %c0_12] : memref<3x256xf32, #tpu.memory_space<vmem>>, vector<1x256xf32>
    %21 = vector.broadcast %20 : vector<1x256xf32> to vector<4x256xf32>
    %22 = arith.mulf %19, %21 : vector<4x256xf32>
    %c2_13 = arith.constant 2 : index
    %c0_14 = arith.constant 0 : index
    %c0_15 = arith.constant 0 : index
    %23 = vector.load %arg2[%c2_13, %c0_14, %c0_15] : memref<9x8x4xf32, #tpu.memory_space<vmem>>, vector<1x8x4xf32>
    %24 = vector.shape_cast %23 : vector<1x8x4xf32> to vector<8x4xf32>
    %cst_16 = arith.constant dense<0.000000e+00> : vector<8x256xf32>
    %25 = tpu.matmul %24, %22, %cst_16 {dimension_numbers = #tpu.dot_dimension_numbers<[1], [0], [0], [1], [0, 0, 1, 1], [], []>} : vector<8x4xf32>, vector<4x256xf32>, vector<8x256xf32> -> vector<8x256xf32>
    %26 = arith.addf %18, %25 : vector<8x256xf32>
    %27 = vector.extract_strided_slice %4 {offsets = [0, 16], sizes = [4, 256], strides = [1, 1]} : vector<4x290xf32> to vector<4x256xf32>
    %c0_17 = arith.constant 0 : index
    %c0_18 = arith.constant 0 : index
    %28 = vector.load %arg3[%c0_17, %c0_18] : memref<3x256xf32, #tpu.memory_space<vmem>>, vector<1x256xf32>
    %29 = vector.broadcast %28 : vector<1x256xf32> to vector<4x256xf32>
    %30 = arith.mulf %27, %29 : vector<4x256xf32>
    %c3 = arith.constant 3 : index
    %c0_19 = arith.constant 0 : index
    %c0_20 = arith.constant 0 : index
    %31 = vector.load %arg2[%c3, %c0_19, %c0_20] : memref<9x8x4xf32, #tpu.memory_space<vmem>>, vector<1x8x4xf32>
    %32 = vector.shape_cast %31 : vector<1x8x4xf32> to vector<8x4xf32>
    %cst_21 = arith.constant dense<0.000000e+00> : vector<8x256xf32>
    %33 = tpu.matmul %32, %30, %cst_21 {dimension_numbers = #tpu.dot_dimension_numbers<[1], [0], [0], [1], [0, 0, 1, 1], [], []>} : vector<8x4xf32>, vector<4x256xf32>, vector<8x256xf32> -> vector<8x256xf32>
    %34 = arith.addf %26, %33 : vector<8x256xf32>
    %35 = vector.extract_strided_slice %4 {offsets = [0, 17], sizes = [4, 256], strides = [1, 1]} : vector<4x290xf32> to vector<4x256xf32>
    %c4 = arith.constant 4 : index
    %c0_22 = arith.constant 0 : index
    %c0_23 = arith.constant 0 : index
    %36 = vector.load %arg2[%c4, %c0_22, %c0_23] : memref<9x8x4xf32, #tpu.memory_space<vmem>>, vector<1x8x4xf32>
    %37 = vector.shape_cast %36 : vector<1x8x4xf32> to vector<8x4xf32>
    %cst_24 = arith.constant dense<0.000000e+00> : vector<8x256xf32>
    %38 = tpu.matmul %37, %35, %cst_24 {dimension_numbers = #tpu.dot_dimension_numbers<[1], [0], [0], [1], [0, 0, 1, 1], [], []>} : vector<8x4xf32>, vector<4x256xf32>, vector<8x256xf32> -> vector<8x256xf32>
    %39 = arith.addf %34, %38 : vector<8x256xf32>
    %40 = vector.extract_strided_slice %4 {offsets = [0, 18], sizes = [4, 256], strides = [1, 1]} : vector<4x290xf32> to vector<4x256xf32>
    %c2_25 = arith.constant 2 : index
    %c0_26 = arith.constant 0 : index
    %41 = vector.load %arg3[%c2_25, %c0_26] : memref<3x256xf32, #tpu.memory_space<vmem>>, vector<1x256xf32>
    %42 = vector.broadcast %41 : vector<1x256xf32> to vector<4x256xf32>
    %43 = arith.mulf %40, %42 : vector<4x256xf32>
    %c5 = arith.constant 5 : index
    %c0_27 = arith.constant 0 : index
    %c0_28 = arith.constant 0 : index
    %44 = vector.load %arg2[%c5, %c0_27, %c0_28] : memref<9x8x4xf32, #tpu.memory_space<vmem>>, vector<1x8x4xf32>
    %45 = vector.shape_cast %44 : vector<1x8x4xf32> to vector<8x4xf32>
    %cst_29 = arith.constant dense<0.000000e+00> : vector<8x256xf32>
    %46 = tpu.matmul %45, %43, %cst_29 {dimension_numbers = #tpu.dot_dimension_numbers<[1], [0], [0], [1], [0, 0, 1, 1], [], []>} : vector<8x4xf32>, vector<4x256xf32>, vector<8x256xf32> -> vector<8x256xf32>
    %47 = arith.addf %39, %46 : vector<8x256xf32>
    %48 = vector.extract_strided_slice %4 {offsets = [0, 32], sizes = [4, 256], strides = [1, 1]} : vector<4x290xf32> to vector<4x256xf32>
    %c0_30 = arith.constant 0 : index
    %c0_31 = arith.constant 0 : index
    %49 = vector.load %arg3[%c0_30, %c0_31] : memref<3x256xf32, #tpu.memory_space<vmem>>, vector<1x256xf32>
    %50 = vector.broadcast %49 : vector<1x256xf32> to vector<4x256xf32>
    %51 = arith.mulf %48, %50 : vector<4x256xf32>
    %c6 = arith.constant 6 : index
    %c0_32 = arith.constant 0 : index
    %c0_33 = arith.constant 0 : index
    %52 = vector.load %arg2[%c6, %c0_32, %c0_33] : memref<9x8x4xf32, #tpu.memory_space<vmem>>, vector<1x8x4xf32>
    %53 = vector.shape_cast %52 : vector<1x8x4xf32> to vector<8x4xf32>
    %cst_34 = arith.constant dense<0.000000e+00> : vector<8x256xf32>
    %54 = tpu.matmul %53, %51, %cst_34 {dimension_numbers = #tpu.dot_dimension_numbers<[1], [0], [0], [1], [0, 0, 1, 1], [], []>} : vector<8x4xf32>, vector<4x256xf32>, vector<8x256xf32> -> vector<8x256xf32>
    %55 = arith.addf %47, %54 : vector<8x256xf32>
    %56 = vector.extract_strided_slice %4 {offsets = [0, 33], sizes = [4, 256], strides = [1, 1]} : vector<4x290xf32> to vector<4x256xf32>
    %c7 = arith.constant 7 : index
    %c0_35 = arith.constant 0 : index
    %c0_36 = arith.constant 0 : index
    %57 = vector.load %arg2[%c7, %c0_35, %c0_36] : memref<9x8x4xf32, #tpu.memory_space<vmem>>, vector<1x8x4xf32>
    %58 = vector.shape_cast %57 : vector<1x8x4xf32> to vector<8x4xf32>
    %cst_37 = arith.constant dense<0.000000e+00> : vector<8x256xf32>
    %59 = tpu.matmul %58, %56, %cst_37 {dimension_numbers = #tpu.dot_dimension_numbers<[1], [0], [0], [1], [0, 0, 1, 1], [], []>} : vector<8x4xf32>, vector<4x256xf32>, vector<8x256xf32> -> vector<8x256xf32>
    %60 = arith.addf %55, %59 : vector<8x256xf32>
    %61 = vector.extract_strided_slice %4 {offsets = [0, 34], sizes = [4, 256], strides = [1, 1]} : vector<4x290xf32> to vector<4x256xf32>
    %c2_38 = arith.constant 2 : index
    %c0_39 = arith.constant 0 : index
    %62 = vector.load %arg3[%c2_38, %c0_39] : memref<3x256xf32, #tpu.memory_space<vmem>>, vector<1x256xf32>
    %63 = vector.broadcast %62 : vector<1x256xf32> to vector<4x256xf32>
    %64 = arith.mulf %61, %63 : vector<4x256xf32>
    %c8 = arith.constant 8 : index
    %c0_40 = arith.constant 0 : index
    %c0_41 = arith.constant 0 : index
    %65 = vector.load %arg2[%c8, %c0_40, %c0_41] : memref<9x8x4xf32, #tpu.memory_space<vmem>>, vector<1x8x4xf32>
    %66 = vector.shape_cast %65 : vector<1x8x4xf32> to vector<8x4xf32>
    %cst_42 = arith.constant dense<0.000000e+00> : vector<8x256xf32>
    %67 = tpu.matmul %66, %64, %cst_42 {dimension_numbers = #tpu.dot_dimension_numbers<[1], [0], [0], [1], [0, 0, 1, 1], [], []>} : vector<8x4xf32>, vector<4x256xf32>, vector<8x256xf32> -> vector<8x256xf32>
    %68 = arith.addf %60, %67 : vector<8x256xf32>
    %c0_43 = arith.constant 0 : index
    %c0_44 = arith.constant 0 : index
    %c0_45 = arith.constant 0 : index
    %69 = vector.load %arg4[%c0_43, %c0_44, %c0_45] : memref<1x8x256xf32, #tpu.memory_space<vmem>>, vector<1x8x256xf32>
    %70 = vector.shape_cast %69 : vector<1x8x256xf32> to vector<8x256xf32>
    %71 = vector.shape_cast %68 : vector<8x256xf32> to vector<1x8x256xf32>
    tpu.vector_store %arg4[%c0_43, %c0_44, %c0_45], %71 {strides = array<i32>} : memref<1x8x256xf32, #tpu.memory_space<vmem>>, vector<1x8x256xf32>,
    %c0_46 = arith.constant 0 : index
    %c0_47 = arith.constant 0 : index
    %72 = vector.load %arg5[%c0_46, %c0_47] : memref<8x1xf32, #tpu.memory_space<vmem>>, vector<8x1xf32>
    %cst_48 = arith.constant dense<0.000000e+00> : vector<8xf32>
    %73 = vector.multi_reduction <add>, %68, %cst_48 [1] : vector<8x256xf32> to vector<8xf32>
    %74 = vector.shape_cast %73 : vector<8xf32> to vector<8x1xf32>
    %75 = arith.addf %72, %74 : vector<8x1xf32>
    %c0_49 = arith.constant 0 : index
    %c0_50 = arith.constant 0 : index
    %76 = vector.load %arg5[%c0_49, %c0_50] : memref<8x1xf32, #tpu.memory_space<vmem>>, vector<8x1xf32>
    tpu.vector_store %arg5[%c0_49, %c0_50], %75 {strides = array<i32>} : memref<8x1xf32, #tpu.memory_space<vmem>>, vector<8x1xf32>,
    %c0_51 = arith.constant 0 : index
    %c0_52 = arith.constant 0 : index
    %77 = vector.load %arg6[%c0_51, %c0_52] : memref<8x1xf32, #tpu.memory_space<vmem>>, vector<8x1xf32>
    %78 = arith.mulf %68, %68 : vector<8x256xf32>
    %cst_53 = arith.constant dense<0.000000e+00> : vector<8xf32>
    %79 = vector.multi_reduction <add>, %78, %cst_53 [1] : vector<8x256xf32> to vector<8xf32>
    %80 = vector.shape_cast %79 : vector<8xf32> to vector<8x1xf32>
    %81 = arith.addf %77, %80 : vector<8x1xf32>
    %c0_54 = arith.constant 0 : index
    %c0_55 = arith.constant 0 : index
    %82 = vector.load %arg6[%c0_54, %c0_55] : memref<8x1xf32, #tpu.memory_space<vmem>>, vector<8x1xf32>
    tpu.vector_store %arg6[%c0_54, %c0_55], %81 {strides = array<i32>} : memref<8x1xf32, #tpu.memory_space<vmem>>, vector<8x1xf32>,
    return
  }
  func.func @transform_0(%arg0: i32) -> (i32, i32, i32) {
    %c0_i32 = arith.constant 0 : i32
    %c0_i32_0 = arith.constant 0 : i32
    %c0_i32_1 = arith.constant 0 : i32
    return %arg0, %c0_i32, %c0_i32_0 : i32, i32, i32
  }
  func.func @transform_1(%arg0: i32) -> (i32, i32, i32) {
    %c0_i32 = arith.constant 0 : i32
    %c0_i32_0 = arith.constant 0 : i32
    %c0_i32_1 = arith.constant 0 : i32
    %c0_i32_2 = arith.constant 0 : i32
    return %c0_i32, %c0_i32_0, %c0_i32_1 : i32, i32, i32
  }
  func.func @transform_2(%arg0: i32) -> (i32, i32) {
    %c0_i32 = arith.constant 0 : i32
    %c0_i32_0 = arith.constant 0 : i32
    %c0_i32_1 = arith.constant 0 : i32
    return %c0_i32, %c0_i32_0 : i32, i32
  }
  func.func @transform_3(%arg0: i32) -> (i32, i32, i32) {
    %c0_i32 = arith.constant 0 : i32
    %c0_i32_0 = arith.constant 0 : i32
    %c0_i32_1 = arith.constant 0 : i32
    return %arg0, %c0_i32, %c0_i32_0 : i32, i32, i32
  }
  func.func @transform_4(%arg0: i32) -> (i32, i32) {
    %c0_i32 = arith.constant 0 : i32
    %c0_i32_0 = arith.constant 0 : i32
    %c0_i32_1 = arith.constant 0 : i32
    return %c0_i32, %c0_i32_0 : i32, i32
  }
  func.func @transform_5(%arg0: i32) -> (i32, i32) {
    %c0_i32 = arith.constant 0 : i32
    %c0_i32_0 = arith.constant 0 : i32
    %c0_i32_1 = arith.constant 0 : i32
    return %c0_i32, %c0_i32_0 : i32, i32
  }
}

module attributes {stable_mosaic.version = 11 : i64} {
  func.func @_bn_relu_kernel(%arg0: i32, %arg1: memref<1x8x256xf32, #tpu.memory_space<vmem>>, %arg2: memref<8x1xf32, #tpu.memory_space<vmem>>, %arg3: memref<8x1xf32, #tpu.memory_space<vmem>>, %arg4: memref<1x8x256xf32, #tpu.memory_space<vmem>>) attributes {dimension_semantics = [#tpu.dimension_semantics<parallel>], iteration_bounds = array<i64: 2>, scalar_prefetch = 0 : i64, scratch_operands = 0 : i64, tpu.core_type = #tpu.core_type<tc>, window_params = [{transform_indices = @transform_0, window_bounds = array<i64: 1, 8, 256>}, {pipeline_mode = #tpu.pipeline_mode<synchronous>, transform_indices = @transform_1, window_bounds = array<i64: 8, 1>}, {pipeline_mode = #tpu.pipeline_mode<synchronous>, transform_indices = @transform_2, window_bounds = array<i64: 8, 1>}, {transform_indices = @transform_3, window_bounds = array<i64: 1, 8, 256>}]} {
    %c0 = arith.constant 0 : index
    %c0_0 = arith.constant 0 : index
    %c0_1 = arith.constant 0 : index
    %0 = vector.load %arg1[%c0, %c0_0, %c0_1] : memref<1x8x256xf32, #tpu.memory_space<vmem>>, vector<1x8x256xf32>
    %1 = vector.shape_cast %0 : vector<1x8x256xf32> to vector<8x256xf32>
    %c0_2 = arith.constant 0 : index
    %c0_3 = arith.constant 0 : index
    %2 = vector.load %arg2[%c0_2, %c0_3] : memref<8x1xf32, #tpu.memory_space<vmem>>, vector<8x1xf32>
    %3 = vector.broadcast %2 : vector<8x1xf32> to vector<8x256xf32>
    %4 = arith.mulf %1, %3 : vector<8x256xf32>
    %c0_4 = arith.constant 0 : index
    %c0_5 = arith.constant 0 : index
    %5 = vector.load %arg3[%c0_4, %c0_5] : memref<8x1xf32, #tpu.memory_space<vmem>>, vector<8x1xf32>
    %6 = vector.broadcast %5 : vector<8x1xf32> to vector<8x256xf32>
    %7 = arith.addf %4, %6 : vector<8x256xf32>
    %cst = arith.constant 0.000000e+00 : f32
    %8 = vector.broadcast %cst : f32 to vector<8x256xf32>
    %9 = arith.maximumf %7, %8 : vector<8x256xf32>
    %c0_6 = arith.constant 0 : index
    %c0_7 = arith.constant 0 : index
    %c0_8 = arith.constant 0 : index
    %10 = vector.load %arg4[%c0_6, %c0_7, %c0_8] : memref<1x8x256xf32, #tpu.memory_space<vmem>>, vector<1x8x256xf32>
    %11 = vector.shape_cast %10 : vector<1x8x256xf32> to vector<8x256xf32>
    %12 = vector.shape_cast %9 : vector<8x256xf32> to vector<1x8x256xf32>
    tpu.vector_store %arg4[%c0_6, %c0_7, %c0_8], %12 {strides = array<i32>} : memref<1x8x256xf32, #tpu.memory_space<vmem>>, vector<1x8x256xf32>,
    return
  }
  func.func @transform_0(%arg0: i32) -> (i32, i32, i32) {
    %c0_i32 = arith.constant 0 : i32
    %c0_i32_0 = arith.constant 0 : i32
    %c0_i32_1 = arith.constant 0 : i32
    return %arg0, %c0_i32, %c0_i32_0 : i32, i32, i32
  }
  func.func @transform_1(%arg0: i32) -> (i32, i32) {
    %c0_i32 = arith.constant 0 : i32
    %c0_i32_0 = arith.constant 0 : i32
    %c0_i32_1 = arith.constant 0 : i32
    return %c0_i32, %c0_i32_0 : i32, i32
  }
  func.func @transform_2(%arg0: i32) -> (i32, i32) {
    %c0_i32 = arith.constant 0 : i32
    %c0_i32_0 = arith.constant 0 : i32
    %c0_i32_1 = arith.constant 0 : i32
    return %c0_i32, %c0_i32_0 : i32, i32
  }
  func.func @transform_3(%arg0: i32) -> (i32, i32, i32) {
    %c0_i32 = arith.constant 0 : i32
    %c0_i32_0 = arith.constant 0 : i32
    %c0_i32_1 = arith.constant 0 : i32
    return %arg0, %c0_i32, %c0_i32_0 : i32, i32, i32
  }
}

</mosaic_0001>

<llo_original>
// kernel: encoder_block.3
$region0: #{encoder_block.3}
  #allocation0 [shape = 'u32[]', space=smem, size = 0x4, offset = 0x4, fixed_abs, tag = 'smem constant byte address 0x4 - core index']
  #allocation1 [shape = 'u32[144,128]{1,0:T(1,128)}', space=vmem, size = 0x12000, scoped, tag = 'internal scratch']
  %s0 = inlined_call_operand.vmem [shape: f32[2,8,256], index: 0, kind: input, shape index: {}]
  %s1 = inlined_call_operand.vmem [shape: f32[8,1], index: 1, kind: input, shape index: {}]
  %s2 = inlined_call_operand.vmem [shape: f32[8,1], index: 2, kind: input, shape index: {}]
  %s3 = inlined_call_operand.vmem [shape: f32[2,8,256], index: 3, kind: output, shape index: {}]
  %s4 = sld [smem:[#allocation0]]
  $region45: #{encoder_block.3} parent=0
    _
  %s6 = ssub.s32 1, %s4
  %s7 = scalar_select 0, %s6, %s4
  loop: start=0, step=1, limit=4
  $region2: #{encoder_block.3} parent=0 // loop_pre_header
    _
  $region3: #{encoder_block.3} parent=0 // loop_header
    %s9 = sphi 0, %s13
    %p10 = scmp.ge.s32.totalorder %s9, 4
    %s19 = sphi 0, %s21
    %s22 = sphi 0, %s19
    %s23 = sphi 0, %s22
    %s39 = sphi 0, %s23
    %s43 = sphi 0, %s43
    %s45 = sphi 0, %s43
    %s46 = sphi 0, %s45
    %s60 = sphi 0, %s46
    %s64 = sphi 0, %s64
    %s66 = sphi 0, %s64
    %s67 = sphi 0, %s66
    %s81 = sphi 0, %s67
    %s87 = sphi 0, %s89
    %s90 = sphi 0, %s87
    %s91 = sphi 0, %s90
    %s107 = sphi 0, %s91
  $region4: #{encoder_block.3} parent=0 // loop_header_branch
    %12 = sbr.rel (%p10) target = $region8
  $region5: #{encoder_block.3} parent=0 // loop_body
    %s14 = ssub.s32 %s9, 1
    %s15 = ssub.s32 %s9, 2
    %s16 = sadd.s32 %s9, 1
    %s17 = ssub.s32 %s9, %s16
    %p18 = scmp.eq.s32.totalorder %s17, 0
    %s20 = sadd.s32 %s19, 1
    %s21 = scalar_select %p18, %s19, %s20
    %p24 = pneg %p18
    %p25 = scmp.eq.s32.totalorder %s9, 1
    %p26 = por %p24, %p25
    %p27 = scmp.ne.s32.totalorder %s19, %s22
    %p28 = scmp.eq.s32.totalorder %s9, 0
    %p29 = por %p27, %p28
    %p30 = scmp.ne.s32.totalorder %s19, %s22
    %p31 = scmp.eq.s32.totalorder %s14, 1
    %p32 = por %p30, %p31
    %p33 = scmp.ne.s32.totalorder %s22, %s23
    %p34 = scmp.eq.s32.totalorder %s14, 0
    %p35 = por %p33, %p34
    %p36 = scmp.ne.s32.totalorder %s22, %s23
    %p37 = scmp.eq.s32.totalorder %s15, 1
    %p38 = por %p36, %p37
    %p40 = scmp.ne.s32.totalorder %s23, %s39
    %p41 = scmp.eq.s32.totalorder %s15, 0
    %p42 = por %p40, %p41
    %s44 = sadd.s32 %s43, 1
    %p47 = scmp.eq.s32.totalorder %s9, 1
    %p48 = scmp.ne.s32.totalorder %s43, %s45
    %p49 = scmp.eq.s32.totalorder %s9, 0
    %p50 = por %p48, %p49
    %p51 = scmp.ne.s32.totalorder %s43, %s45
    %p52 = scmp.eq.s32.totalorder %s14, 1
    %p53 = por %p51, %p52
    %p54 = scmp.ne.s32.totalorder %s45, %s46
    %p55 = scmp.eq.s32.totalorder %s14, 0
    %p56 = por %p54, %p55
    %p57 = scmp.ne.s32.totalorder %s45, %s46
    %p58 = scmp.eq.s32.totalorder %s15, 1
    %p59 = por %p57, %p58
    %p61 = scmp.ne.s32.totalorder %s46, %s60
    %p62 = scmp.eq.s32.totalorder %s15, 0
    %p63 = por %p61, %p62
    %s65 = sadd.s32 %s64, 1
    %p68 = scmp.eq.s32.totalorder %s9, 1
    %p69 = scmp.ne.s32.totalorder %s64, %s66
    %p70 = scmp.eq.s32.totalorder %s9, 0
    %p71 = por %p69, %p70
    %p72 = scmp.ne.s32.totalorder %s64, %s66
    %p73 = scmp.eq.s32.totalorder %s14, 1
    %p74 = por %p72, %p73
    %p75 = scmp.ne.s32.totalorder %s66, %s67
    %p76 = scmp.eq.s32.totalorder %s14, 0
    %p77 = por %p75, %p76
    %p78 = scmp.ne.s32.totalorder %s66, %s67
    %p79 = scmp.eq.s32.totalorder %s15, 1
    %p80 = por %p78, %p79
    %p82 = scmp.ne.s32.totalorder %s67, %s81
    %p83 = scmp.eq.s32.totalorder %s15, 0
    %p84 = por %p82, %p83
    %s85 = ssub.s32 %s9, %s16
    %p86 = scmp.eq.s32.totalorder %s85, 0
    %s88 = sadd.s32 %s87, 1
    %s89 = scalar_select %p86, %s87, %s88
    %p92 = pneg %p86
    %p93 = scmp.eq.s32.totalorder %s9, 1
    %p94 = por %p92, %p93
    %p95 = scmp.ne.s32.totalorder %s87, %s90
    %p96 = scmp.eq.s32.totalorder %s9, 0
    %p97 = por %p95, %p96
    %p98 = scmp.ne.s32.totalorder %s87, %s90
    %p99 = scmp.eq.s32.totalorder %s14, 1
    %p100 = por %p98, %p99
    %p101 = scmp.ne.s32.totalorder %s90, %s91
    %p102 = scmp.eq.s32.totalorder %s14, 0
    %p103 = por %p101, %p102
    %p104 = scmp.ne.s32.totalorder %s90, %s91
    %p105 = scmp.eq.s32.totalorder %s15, 1
    %p106 = por %p104, %p105
    %p108 = scmp.ne.s32.totalorder %s91, %s107
    %p109 = scmp.eq.s32.totalorder %s15, 0
    %p110 = por %p108, %p109
    %p111 = scmp.le.s32.totalorder 1, %s9
    %p112 = scmp.lt.s32.totalorder %s9, 3
    %p113 = pnand %p111, %p112
    %p114 = pneg %p113
    // Predicated region
    $region9: #{encoder_block.3} parent=5 // pred_check
      _
    $region10: #{encoder_block.3} parent=5 // pred_check_branch
      %116 = sbr.rel (%p113) target = $region12
    $region11: #{encoder_block.3} parent=5 // pred_region
      %s117 = ssub.s32 %s9, 1
      // Predicated region
      $region13: #{encoder_block.3} parent=11 // pred_check
        %p118 = pneg %p56
      $region14: #{encoder_block.3} parent=11 // pred_check_branch
        %120 = sbr.rel (%p118) target = $region16
      $region15: #{encoder_block.3} parent=11 // pred_region
        _
      $region16: #{encoder_block.3} parent=11 // pred_fallthru
        _
      // Predicated region
      $region17: #{encoder_block.3} parent=11 // pred_check
        %p121 = pneg %p77
      $region18: #{encoder_block.3} parent=11 // pred_check_branch
        %123 = sbr.rel (%p121) target = $region20
      $region19: #{encoder_block.3} parent=11 // pred_region
        _
      $region20: #{encoder_block.3} parent=11 // pred_fallthru
        _
    $region12: #{encoder_block.3} parent=5 // pred_fallthru
      _
    %p124 = scmp.lt.s32.totalorder %s9, 2
    // Predicated region
    $region21: #{encoder_block.3} parent=5 // pred_check
      %p125 = pneg %p124
    $region22: #{encoder_block.3} parent=5 // pred_check_branch
      %127 = sbr.rel (%p125) target = $region24
    $region23: #{encoder_block.3} parent=5 // pred_region
      // Predicated region
      $region25: #{encoder_block.3} parent=23 // pred_check
        %p128 = pneg %p29
      $region26: #{encoder_block.3} parent=23 // pred_check_branch
        %130 = sbr.rel (%p128) target = $region28
      $region27: #{encoder_block.3} parent=23 // pred_region
        %p131 = scmp.lt.s32.totalorder %s9, 1
        %s132 = scalar_select %p131, %s9, 1
        %s133 = smul.addr %s132, 2
        %s134 = smul.addr %s133, 8
        %s135 = scalar_lea.vmem %s0, %s134
      $region28: #{encoder_block.3} parent=23 // pred_fallthru
        _
    $region24: #{encoder_block.3} parent=5 // pred_fallthru
      _
    %p136 = scmp.le.s32.totalorder 1, %s9
    %p137 = scmp.lt.s32.totalorder %s9, 3
    %p138 = pnand %p136, %p137
    %p139 = pneg %p138
    // Predicated region
    $region29: #{encoder_block.3} parent=5 // pred_check
      _
    $region30: #{encoder_block.3} parent=5 // pred_check_branch
      %141 = sbr.rel (%p138) target = $region32
    $region31: #{encoder_block.3} parent=5 // pred_region
      %s142 = ssub.s32 %s9, 1
      %p143 = scmp.lt.s32.totalorder %s14, 1
      %s144 = scalar_select %p143, %s14, 1
      %s145 = smul.addr %s144, 2
      %s146 = smul.addr %s145, 8
      %s147 = scalar_lea.vmem %s0, %s146
      %p148 = pneg %p35
      %p149 = pneg %p32
      %p150 = pneg %p56
      %p151 = pneg %p53
      %p152 = pneg %p77
      %p153 = pneg %p74
      %p154 = pneg %p103
      %p155 = pneg %p100
      %p156 = scmp.lt.s32.totalorder %s14, 1
      %s157 = scalar_select %p156, %s14, 1
      %s158 = smul.addr %s157, 2
      %s159 = smul.addr %s158, 8
      %s160 = scalar_lea.vmem %s3, %s159
      %p161 = scmp.lt.s32.totalorder %s14, 1
      %s162 = scalar_select %p161, %s14, 1
      %s163 = smul.addr %s162, 2
      %s164 = smul.addr %s163, 8
      %s165 = scalar_lea.vmem %s0, %s164
      %p166 = scmp.lt.s32.totalorder %s14, 1
      %s167 = scalar_select %p166, %s14, 1
      %s168 = smul.addr %s167, 2
      %s169 = smul.addr %s168, 8
      %s170 = scalar_lea.vmem %s3, %s169
      %v171 = vld [vmem:[%s165] sm:$0xff]
      %v172 = vld [vmem:[%s165 + $0x8] sm:$0xff]
      %v173 = vld [vmem:[%s1] sm:$0xff]
      %175 = vset.pattern.permute.xlu0 0
      %176 = vperm.xlu0 %175, %v173
      %v177 = vpop.permute.xlu0 %176
      %v179 = vmul.f32 %v171, %v177
      %v180 = vmul.f32 %v172, %v177
      %v181 = vld [vmem:[%s2] sm:$0xff]
      %183 = vset.pattern.permute.xlu0 0
      %184 = vperm.xlu0 %183, %v181
      %v185 = vpop.permute.xlu0 %184
      %v187 = vadd.f32 %v179, %v185
      %v188 = vadd.f32 %v180, %v185
      %v189 = vmax.f32 %v187, 0.0
      %v190 = vmax.f32 %v188, 0.0
      %191 = vst [vmem:[%s170] sm:$0xff] %v189
      %192 = vst [vmem:[%s170 + $0x8] sm:$0xff] %v190
      %p193 = scmp.lt.s32.totalorder %s14, 1
      %s194 = scalar_select %p193, %s14, 1
      %s195 = smul.addr %s194, 2
      %s196 = smul.addr %s195, 8
      %s197 = scalar_lea.vmem %s3, %s196
      // Predicated region
      $region33: #{encoder_block.3} parent=31 // pred_check
        %p198 = pneg %p100
      $region34: #{encoder_block.3} parent=31 // pred_check_branch
        %200 = sbr.rel (%p198) target = $region36
      $region35: #{encoder_block.3} parent=31 // pred_region
        _
      $region36: #{encoder_block.3} parent=31 // pred_fallthru
        _
    $region32: #{encoder_block.3} parent=5 // pred_fallthru
      _
    %p201 = scmp.le.s32.totalorder 2, %s9
    // Predicated region
    $region37: #{encoder_block.3} parent=5 // pred_check
      %p202 = pneg %p201
    $region38: #{encoder_block.3} parent=5 // pred_check_branch
      %204 = sbr.rel (%p202) target = $region40
    $region39: #{encoder_block.3} parent=5 // pred_region
      %s205 = ssub.s32 %s9, 2
      // Predicated region
      $region41: #{encoder_block.3} parent=39 // pred_check
        %p206 = pneg %p106
      $region42: #{encoder_block.3} parent=39 // pred_check_branch
        %208 = sbr.rel (%p206) target = $region44
      $region43: #{encoder_block.3} parent=39 // pred_region
        %p209 = scmp.lt.s32.totalorder %s15, 1
        %s210 = scalar_select %p209, %s15, 1
        %s211 = smul.addr %s210, 2
        %s212 = smul.addr %s211, 8
        %s213 = scalar_lea.vmem %s3, %s212
      $region44: #{encoder_block.3} parent=39 // pred_fallthru
        _
    $region40: #{encoder_block.3} parent=5 // pred_fallthru
      _
  $region6: #{encoder_block.3} parent=0 // loop_footer
    %s13 = sadd.s32 1, %s9
  $region7: #{encoder_block.3} parent=0 // loop_footer_branch
    %8 = sbr.rel target = $region3
  $region8: #{encoder_block.3} parent=0 // loop_exit
    _

// kernel: encoder_block.2
$region0: #{encoder_block.2}
  #allocation0 [shape = 'u32[]', space=smem, size = 0x4, offset = 0x4, fixed_abs, tag = 'smem constant byte address 0x4 - core index']
  #allocation1 [shape = 'u32[144,128]{1,0:T(1,128)}', space=vmem, size = 0x12000, scoped, tag = 'internal scratch']
  %s0 = inlined_call_operand.vmem [shape: f32[2,4,290], index: 0, kind: input, shape index: {}]
  %s1 = inlined_call_operand.vmem [shape: f32[9,8,4], index: 1, kind: input, shape index: {}]
  %s2 = inlined_call_operand.vmem [shape: f32[3,256], index: 2, kind: input, shape index: {}]
  %s3 = inlined_call_operand.vmem [shape: f32[2,8,256], index: 3, kind: output, shape index: {0}]
  %s4 = inlined_call_operand.vmem [shape: f32[8,1], index: 4, kind: output, shape index: {1}]
  %s5 = inlined_call_operand.vmem [shape: f32[8,1], index: 5, kind: output, shape index: {2}]
  %6 = xla_tuple %s3, %s4, %s5
  %s7 = sld [smem:[#allocation0]]
  $region65: #{encoder_block.2} parent=0
    _
  %s9 = ssub.s32 1, %s7
  %s10 = scalar_select 0, %s9, %s7
  loop: start=0, step=1, limit=4
  $region2: #{encoder_block.2} parent=0 // loop_pre_header
    _
  $region3: #{encoder_block.2} parent=0 // loop_header
    %s12 = sphi 0, %s16
    %p13 = scmp.ge.s32.totalorder %s12, 4
    %s22 = sphi 0, %s24
    %s25 = sphi 0, %s22
    %s26 = sphi 0, %s25
    %s42 = sphi 0, %s26
    %s46 = sphi 0, %s46
    %s48 = sphi 0, %s46
    %s49 = sphi 0, %s48
    %s63 = sphi 0, %s49
    %s67 = sphi 0, %s67
    %s69 = sphi 0, %s67
    %s70 = sphi 0, %s69
    %s84 = sphi 0, %s70
    %s90 = sphi 0, %s92
    %s93 = sphi 0, %s90
    %s94 = sphi 0, %s93
    %s110 = sphi 0, %s94
    %s114 = sphi 0, %s114
    %s116 = sphi 0, %s114
    %s117 = sphi 0, %s116
    %s131 = sphi 0, %s117
    %s135 = sphi 0, %s135
    %s137 = sphi 0, %s135
    %s138 = sphi 0, %s137
    %s152 = sphi 0, %s138
  $region4: #{encoder_block.2} parent=0 // loop_header_branch
    %15 = sbr.rel (%p13) target = $region8
  $region5: #{encoder_block.2} parent=0 // loop_body
    %s17 = ssub.s32 %s12, 1
    %s18 = ssub.s32 %s12, 2
    %s19 = sadd.s32 %s12, 1
    %s20 = ssub.s32 %s12, %s19
    %p21 = scmp.eq.s32.totalorder %s20, 0
    %s23 = sadd.s32 %s22, 1
    %s24 = scalar_select %p21, %s22, %s23
    %p27 = pneg %p21
    %p28 = scmp.eq.s32.totalorder %s12, 1
    %p29 = por %p27, %p28
    %p30 = scmp.ne.s32.totalorder %s22, %s25
    %p31 = scmp.eq.s32.totalorder %s12, 0
    %p32 = por %p30, %p31
    %p33 = scmp.ne.s32.totalorder %s22, %s25
    %p34 = scmp.eq.s32.totalorder %s17, 1
    %p35 = por %p33, %p34
    %p36 = scmp.ne.s32.totalorder %s25, %s26
    %p37 = scmp.eq.s32.totalorder %s17, 0
    %p38 = por %p36, %p37
    %p39 = scmp.ne.s32.totalorder %s25, %s26
    %p40 = scmp.eq.s32.totalorder %s18, 1
    %p41 = por %p39, %p40
    %p43 = scmp.ne.s32.totalorder %s26, %s42
    %p44 = scmp.eq.s32.totalorder %s18, 0
    %p45 = por %p43, %p44
    %s47 = sadd.s32 %s46, 1
    %p50 = scmp.eq.s32.totalorder %s12, 1
    %p51 = scmp.ne.s32.totalorder %s46, %s48
    %p52 = scmp.eq.s32.totalorder %s12, 0
    %p53 = por %p51, %p52
    %p54 = scmp.ne.s32.totalorder %s46, %s48
    %p55 = scmp.eq.s32.totalorder %s17, 1
    %p56 = por %p54, %p55
    %p57 = scmp.ne.s32.totalorder %s48, %s49
    %p58 = scmp.eq.s32.totalorder %s17, 0
    %p59 = por %p57, %p58
    %p60 = scmp.ne.s32.totalorder %s48, %s49
    %p61 = scmp.eq.s32.totalorder %s18, 1
    %p62 = por %p60, %p61
    %p64 = scmp.ne.s32.totalorder %s49, %s63
    %p65 = scmp.eq.s32.totalorder %s18, 0
    %p66 = por %p64, %p65
    %s68 = sadd.s32 %s67, 1
    %p71 = scmp.eq.s32.totalorder %s12, 1
    %p72 = scmp.ne.s32.totalorder %s67, %s69
    %p73 = scmp.eq.s32.totalorder %s12, 0
    %p74 = por %p72, %p73
    %p75 = scmp.ne.s32.totalorder %s67, %s69
    %p76 = scmp.eq.s32.totalorder %s17, 1
    %p77 = por %p75, %p76
    %p78 = scmp.ne.s32.totalorder %s69, %s70
    %p79 = scmp.eq.s32.totalorder %s17, 0
    %p80 = por %p78, %p79
    %p81 = scmp.ne.s32.totalorder %s69, %s70
    %p82 = scmp.eq.s32.totalorder %s18, 1
    %p83 = por %p81, %p82
    %p85 = scmp.ne.s32.totalorder %s70, %s84
    %p86 = scmp.eq.s32.totalorder %s18, 0
    %p87 = por %p85, %p86
    %s88 = ssub.s32 %s12, %s19
    %p89 = scmp.eq.s32.totalorder %s88, 0
    %s91 = sadd.s32 %s90, 1
    %s92 = scalar_select %p89, %s90, %s91
    %p95 = pneg %p89
    %p96 = scmp.eq.s32.totalorder %s12, 1
    %p97 = por %p95, %p96
    %p98 = scmp.ne.s32.totalorder %s90, %s93
    %p99 = scmp.eq.s32.totalorder %s12, 0
    %p100 = por %p98, %p99
    %p101 = scmp.ne.s32.totalorder %s90, %s93
    %p102 = scmp.eq.s32.totalorder %s17, 1
    %p103 = por %p101, %p102
    %p104 = scmp.ne.s32.totalorder %s93, %s94
    %p105 = scmp.eq.s32.totalorder %s17, 0
    %p106 = por %p104, %p105
    %p107 = scmp.ne.s32.totalorder %s93, %s94
    %p108 = scmp.eq.s32.totalorder %s18, 1
    %p109 = por %p107, %p108
    %p111 = scmp.ne.s32.totalorder %s94, %s110
    %p112 = scmp.eq.s32.totalorder %s18, 0
    %p113 = por %p111, %p112
    %s115 = sadd.s32 %s114, 1
    %p118 = scmp.eq.s32.totalorder %s12, 1
    %p119 = scmp.ne.s32.totalorder %s114, %s116
    %p120 = scmp.eq.s32.totalorder %s12, 0
    %p121 = por %p119, %p120
    %p122 = scmp.ne.s32.totalorder %s114, %s116
    %p123 = scmp.eq.s32.totalorder %s17, 1
    %p124 = por %p122, %p123
    %p125 = scmp.ne.s32.totalorder %s116, %s117
    %p126 = scmp.eq.s32.totalorder %s17, 0
    %p127 = por %p125, %p126
    %p128 = scmp.ne.s32.totalorder %s116, %s117
    %p129 = scmp.eq.s32.totalorder %s18, 1
    %p130 = por %p128, %p129
    %p132 = scmp.ne.s32.totalorder %s117, %s131
    %p133 = scmp.eq.s32.totalorder %s18, 0
    %p134 = por %p132, %p133
    %s136 = sadd.s32 %s135, 1
    %p139 = scmp.eq.s32.totalorder %s12, 1
    %p140 = scmp.ne.s32.totalorder %s135, %s137
    %p141 = scmp.eq.s32.totalorder %s12, 0
    %p142 = por %p140, %p141
    %p143 = scmp.ne.s32.totalorder %s135, %s137
    %p144 = scmp.eq.s32.totalorder %s17, 1
    %p145 = por %p143, %p144
    %p146 = scmp.ne.s32.totalorder %s137, %s138
    %p147 = scmp.eq.s32.totalorder %s17, 0
    %p148 = por %p146, %p147
    %p149 = scmp.ne.s32.totalorder %s137, %s138
    %p150 = scmp.eq.s32.totalorder %s18, 1
    %p151 = por %p149, %p150
    %p153 = scmp.ne.s32.totalorder %s138, %s152
    %p154 = scmp.eq.s32.totalorder %s18, 0
    %p155 = por %p153, %p154
    %p156 = scmp.le.s32.totalorder 1, %s12
    %p157 = scmp.lt.s32.totalorder %s12, 3
    %p158 = pnand %p156, %p157
    %p159 = pneg %p158
    // Predicated region
    $region9: #{encoder_block.2} parent=5 // pred_check
      _
    $region10: #{encoder_block.2} parent=5 // pred_check_branch
      %161 = sbr.rel (%p158) target = $region12
    $region11: #{encoder_block.2} parent=5 // pred_region
      %s162 = ssub.s32 %s12, 1
      // Predicated region
      $region13: #{encoder_block.2} parent=11 // pred_check
        %p163 = pneg %p59
      $region14: #{encoder_block.2} parent=11 // pred_check_branch
        %165 = sbr.rel (%p163) target = $region16
      $region15: #{encoder_block.2} parent=11 // pred_region
        _
      $region16: #{encoder_block.2} parent=11 // pred_fallthru
        _
      // Predicated region
      $region17: #{encoder_block.2} parent=11 // pred_check
        %p166 = pneg %p80
      $region18: #{encoder_block.2} parent=11 // pred_check_branch
        %168 = sbr.rel (%p166) target = $region20
      $region19: #{encoder_block.2} parent=11 // pred_region
        _
      $region20: #{encoder_block.2} parent=11 // pred_fallthru
        _
    $region12: #{encoder_block.2} parent=5 // pred_fallthru
      _
    %p169 = scmp.lt.s32.totalorder %s12, 2
    // Predicated region
    $region21: #{encoder_block.2} parent=5 // pred_check
      %p170 = pneg %p169
    $region22: #{encoder_block.2} parent=5 // pred_check_branch
      %172 = sbr.rel (%p170) target = $region24
    $region23: #{encoder_block.2} parent=5 // pred_region
      // Predicated region
      $region25: #{encoder_block.2} parent=23 // pred_check
        %p173 = pneg %p32
      $region26: #{encoder_block.2} parent=23 // pred_check_branch
        %175 = sbr.rel (%p173) target = $region28
      $region27: #{encoder_block.2} parent=23 // pred_region
        %p176 = scmp.lt.s32.totalorder %s12, 1
        %s177 = scalar_select %p176, %s12, 1
        %s178 = smul.addr %s177, 3
        %s179 = smul.addr %s178, 4
        %s180 = scalar_lea.vmem %s0, %s179
      $region28: #{encoder_block.2} parent=23 // pred_fallthru
        _
    $region24: #{encoder_block.2} parent=5 // pred_fallthru
      _
    %p181 = scmp.le.s32.totalorder 1, %s12
    %p182 = scmp.lt.s32.totalorder %s12, 3
    %p183 = pnand %p181, %p182
    %p184 = pneg %p183
    // Predicated region
    $region29: #{encoder_block.2} parent=5 // pred_check
      _
    $region30: #{encoder_block.2} parent=5 // pred_check_branch
      %186 = sbr.rel (%p183) target = $region32
    $region31: #{encoder_block.2} parent=5 // pred_region
      %s187 = ssub.s32 %s12, 1
      %p188 = scmp.lt.s32.totalorder %s17, 1
      %s189 = scalar_select %p188, %s17, 1
      %s190 = smul.addr %s189, 3
      %s191 = smul.addr %s190, 4
      %s192 = scalar_lea.vmem %s0, %s191
      %p193 = pneg %p38
      %p194 = pneg %p35
      %p195 = pneg %p59
      %p196 = pneg %p56
      %p197 = pneg %p80
      %p198 = pneg %p77
      %p199 = pneg %p106
      %p200 = pneg %p103
      %p201 = scmp.lt.s32.totalorder %s17, 1
      %s202 = scalar_select %p201, %s17, 1
      %s203 = smul.addr %s202, 2
      %s204 = smul.addr %s203, 8
      %s205 = scalar_lea.vmem %s3, %s204
      %p206 = pneg %p127
      %p207 = pneg %p124
      %p208 = pneg %p148
      %p209 = pneg %p145
      %p210 = scmp.lt.s32.totalorder %s17, 1
      %s211 = scalar_select %p210, %s17, 1
      %s212 = smul.addr %s211, 3
      %s213 = smul.addr %s212, 4
      %s214 = scalar_lea.vmem %s0, %s213
      %p215 = scmp.lt.s32.totalorder %s17, 1
      %s216 = scalar_select %p215, %s17, 1
      %s217 = smul.addr %s216, 2
      %s218 = smul.addr %s217, 8
      %s219 = scalar_lea.vmem %s3, %s218
      %p220 = scmp.eq.s32.totalorder %s17, 0
      // Predicated region
      $region33: #{encoder_block.2} parent=31 // pred_check
        %p221 = pneg %p220
      $region34: #{encoder_block.2} parent=31 // pred_check_branch
        %223 = sbr.rel (%p221) target = $region36
      $region35: #{encoder_block.2} parent=31 // pred_region
        %vm224 = vcmask 7168
        %225 = vst.msk [vmem:[%s4] sm:$0xff] %vm224, 0.0
        %226 = vst.msk [vmem:[%s5] sm:$0xff] %vm224, 0.0
      $region36: #{encoder_block.2} parent=31 // pred_fallthru
        _
      %v227 = vld [vmem:[%s214] sm:$0xff]
      %v228 = vld [vmem:[%s214 + $0x8] sm:$0xf]
      %v229 = vld [vmem:[%s2] ss:$4 sm:$0x3]
      %v231 = vlaneseq
      %v232 = vshrl.u32 %v231, 7
      %v233 = vsub.s32 0, %v232
      %v234 = vrot.slane %v229, %v233
      %v235 = vlaneseq
      %v236 = vshrl.u32 %v235, 7
      %v237 = vsub.s32 1, %v236
      %v238 = vrot.slane %v229, %v237
      %v239 = vcombine.low %v234, %v238
      %v241 = vmul.f32 %v227, %v239
      %v242 = vld [vmem:[%s1] sm:$0xff]
      %s243 = scalar_lea.vmem %s1, 8
      %v244 = vld [vmem:[%s243] sm:$0xff]
      %v247 = vcombine.high %v227, %v227
      %248 = vrot.lane.b32.xlu0 %v227, 127
      %v249 = vpop.permute.xlu0 %248
      %250 = vrot.lane.b32.xlu0 %v247, 127
      %v251 = vpop.permute.xlu0 %250
      %252 = vrot.lane.b32.xlu0 %v228, 127
      %v253 = vpop.permute.xlu0 %252
      %vm254 = vcmask 1039360
      %v255 = vsel %vm254, %v249, %v251
      %v256 = vsel %vm254, %v251, %v253
      %vm257 = vcmask 31744
      %v259 = vsel %vm257, %v244, 0
      %vm261 = vcmask 1043456
      %v262 = vsel %vm261, %v255, 0
      %v264 = vsel %vm261, %v256, 0
      %266 = vmatprep.subr.mxu0 0.0
      %267 = vmatpush1.msra.mxu0 0.0
      %268 = vmatprep.subr.mxu0 0.0
      %269 = vmatpush1.msra.mxu0 0.0
      %270 = vmatprep.subr.mxu0 0.0
      %271 = vmatpush1.msra.mxu0 0.0
      %272 = vmatprep.subr.mxu0 0.0
      %273 = vmatpush1.msra.mxu0 0.0
      %274 = vmatprep.subr.mxu0 0.0
      %275 = vmatpush1.msra.mxu0 0.0
      %276 = vmatprep.subr.mxu0 0.0
      %277 = vmatpush1.msra.mxu0 0.0
      %278 = vmatprep.subr.mxu0 0.0
      %279 = vmatpush1.msra.mxu0 0.0
      %280 = vmatprep.subr.mxu0 0.0
      %281 = vmatpush1.msra.mxu0 0.0
      %282 = vmatprep.subr.mxu0 0.0
      %283 = vmatpush1.msra.mxu0 0.0
      %284 = vmatprep.subr.mxu0 0.0
      %285 = vmatpush1.msra.mxu0 0.0
      %286 = vmatprep.subr.mxu0 0.0
      %287 = vmatpush1.msra.mxu0 0.0
      %288 = vmatprep.subr.mxu0 0.0
      %289 = vmatpush1.msra.mxu0 0.0
      %290 = vmatprep.subr.mxu0 0.0
      %291 = vmatpush1.msra.mxu0 0.0
      %292 = vmatprep.subr.mxu0 0.0
      %293 = vmatpush1.msra.mxu0 0.0
      %294 = vmatprep.subr.mxu0 0.0
      %295 = vmatpush1.msra.mxu0 0.0
      %296 = vmatprep.subr.mxu0 %v264
      %297 = vmatpush1.msra.mxu0 %v262
      %298 = vmatprep.subr.mxu0 0.0
      %299 = vmatpush2.msra.mxu0 0.0
      %300 = vmatprep.subr.mxu0 0.0
      %301 = vmatpush2.msra.mxu0 0.0
      %302 = vmatprep.subr.mxu0 0.0
      %303 = vmatpush2.msra.mxu0 0.0
      %304 = vmatprep.subr.mxu0 0.0
      %305 = vmatpush2.msra.mxu0 0.0
      %306 = vmatprep.subr.mxu0 0.0
      %307 = vmatpush2.msra.mxu0 0.0
      %308 = vmatprep.subr.mxu0 0.0
      %309 = vmatpush2.msra.mxu0 0.0
      %310 = vmatprep.subr.mxu0 0.0
      %311 = vmatpush2.msra.mxu0 0.0
      %312 = vmatprep.subr.mxu0 0.0
      %313 = vmatpush2.msra.mxu0 0.0
      %314 = vmatprep.subr.mxu0 0.0
      %315 = vmatpush2.msra.mxu0 0.0
      %316 = vmatprep.subr.mxu0 0.0
      %317 = vmatpush2.msra.mxu0 0.0
      %318 = vmatprep.subr.mxu0 0.0
      %319 = vmatpush2.msra.mxu0 0.0
      %320 = vmatprep.subr.mxu0 0.0
      %321 = vmatpush2.msra.mxu0 0.0
      %322 = vmatprep.subr.mxu0 0.0
      %323 = vmatpush2.msra.mxu0 0.0
      %324 = vmatprep.subr.mxu0 0.0
      %325 = vmatpush2.msra.mxu0 0.0
      %326 = vmatprep.subr.mxu0 0.0
      %327 = vmatpush2.msra.mxu0 0.0
      %328 = vmatprep.subr.mxu0 0.0
      %329 = vmatpush2.msra.mxu0 0.0
      %330 = vmatprep.mubr.f32.mxu0 0.0
      %331 = vmatmul.mubr.f32.gmra.mxu0 %v259
      %v332 = vpop.f32.mrf.mxu0
      %v333 = vadd.f32 0.0, %v332
      %v334 = vpop.f32.mrf.mxu0
      %v335 = vadd.f32 0.0, %v334
      %336 = vdwg.mxu0
      %v338 = vcombine.high %v241, %v241
      %v340 = vsel %vm257, %v242, 0
      %v342 = vsel %vm261, %v241, 0
      %v344 = vsel %vm261, %v338, 0
      %346 = vmatprep.subr.mxu0 0.0
      %347 = vmatpush1.msra.mxu0 0.0
      %348 = vmatprep.subr.mxu0 0.0
      %349 = vmatpush1.msra.mxu0 0.0
      %350 = vmatprep.subr.mxu0 0.0
      %351 = vmatpush1.msra.mxu0 0.0
      %352 = vmatprep.subr.mxu0 0.0
      %353 = vmatpush1.msra.mxu0 0.0
      %354 = vmatprep.subr.mxu0 0.0
      %355 = vmatpush1.msra.mxu0 0.0
      %356 = vmatprep.subr.mxu0 0.0
      %357 = vmatpush1.msra.mxu0 0.0
      %358 = vmatprep.subr.mxu0 0.0
      %359 = vmatpush1.msra.mxu0 0.0
      %360 = vmatprep.subr.mxu0 0.0
      %361 = vmatpush1.msra.mxu0 0.0
      %362 = vmatprep.subr.mxu0 0.0
      %363 = vmatpush1.msra.mxu0 0.0
      %364 = vmatprep.subr.mxu0 0.0
      %365 = vmatpush1.msra.mxu0 0.0
      %366 = vmatprep.subr.mxu0 0.0
      %367 = vmatpush1.msra.mxu0 0.0
      %368 = vmatprep.subr.mxu0 0.0
      %369 = vmatpush1.msra.mxu0 0.0
      %370 = vmatprep.subr.mxu0 0.0
      %371 = vmatpush1.msra.mxu0 0.0
      %372 = vmatprep.subr.mxu0 0.0
      %373 = vmatpush1.msra.mxu0 0.0
      %374 = vmatprep.subr.mxu0 0.0
      %375 = vmatpush1.msra.mxu0 0.0
      %376 = vmatprep.subr.mxu0 %v344
      %377 = vmatpush1.msra.mxu0 %v342
      %378 = vmatprep.subr.mxu0 0.0
      %379 = vmatpush2.msra.mxu0 0.0
      %380 = vmatprep.subr.mxu0 0.0
      %381 = vmatpush2.msra.mxu0 0.0
      %382 = vmatprep.subr.mxu0 0.0
      %383 = vmatpush2.msra.mxu0 0.0
      %384 = vmatprep.subr.mxu0 0.0
      %385 = vmatpush2.msra.mxu0 0.0
      %386 = vmatprep.subr.mxu0 0.0
      %387 = vmatpush2.msra.mxu0 0.0
      %388 = vmatprep.subr.mxu0 0.0
      %389 = vmatpush2.msra.mxu0 0.0
      %390 = vmatprep.subr.mxu0 0.0
      %391 = vmatpush2.msra.mxu0 0.0
      %392 = vmatprep.subr.mxu0 0.0
      %393 = vmatpush2.msra.mxu0 0.0
      %394 = vmatprep.subr.mxu0 0.0
      %395 = vmatpush2.msra.mxu0 0.0
      %396 = vmatprep.subr.mxu0 0.0
      %397 = vmatpush2.msra.mxu0 0.0
      %398 = vmatprep.subr.mxu0 0.0
      %399 = vmatpush2.msra.mxu0 0.0
      %400 = vmatprep.subr.mxu0 0.0
      %401 = vmatpush2.msra.mxu0 0.0
      %402 = vmatprep.subr.mxu0 0.0
      %403 = vmatpush2.msra.mxu0 0.0
      %404 = vmatprep.subr.mxu0 0.0
      %405 = vmatpush2.msra.mxu0 0.0
      %406 = vmatprep.subr.mxu0 0.0
      %407 = vmatpush2.msra.mxu0 0.0
      %408 = vmatprep.subr.mxu0 0.0
      %409 = vmatpush2.msra.mxu0 0.0
      %410 = vmatprep.mubr.f32.mxu0 0.0
      %411 = vmatmul.mubr.f32.gmra.mxu0 %v340
      %v412 = vpop.f32.mrf.mxu0
      %v413 = vadd.f32 %v333, %v412
      %v414 = vpop.f32.mrf.mxu0
      %v415 = vadd.f32 %v335, %v414
      %416 = vdwg.mxu0
      %s417 = scalar_lea.vmem %s2, 2
      %v418 = vld [vmem:[%s417] ss:$4 sm:$0x3]
      %v420 = vlaneseq
      %v421 = vshrl.u32 %v420, 7
      %v422 = vsub.s32 0, %v421
      %v423 = vrot.slane %v418, %v422
      %v424 = vlaneseq
      %v425 = vshrl.u32 %v424, 7
      %v426 = vsub.s32 1, %v425
      %v427 = vrot.slane %v418, %v426
      %v428 = vcombine.low %v423, %v427
      %429 = vrot.lane.b32.xlu0 %v428, 2
      %v430 = vpop.permute.xlu0 %429
      %v431 = vrot.slane %v430, 4
      %vm432 = vcmask 15360
      %v433 = vsel %vm432, %v431, %v430
      %v436 = vmul.f32 %v227, %v433
      %v437 = vmul.f32 %v228, %v431
      %s438 = scalar_lea.vmem %s1, 16
      %v439 = vld [vmem:[%s438] sm:$0xff]
      %v442 = vcombine.high %v436, %v436
      %443 = vrot.lane.b32.xlu0 %v436, 126
      %v444 = vpop.permute.xlu0 %443
      %445 = vrot.lane.b32.xlu0 %v442, 126
      %v446 = vpop.permute.xlu0 %445
      %447 = vrot.lane.b32.xlu0 %v437, 126
      %v448 = vpop.permute.xlu0 %447
      %vm449 = vcmask 1031168
      %v450 = vsel %vm449, %v444, %v446
      %v451 = vsel %vm449, %v446, %v448
      %v453 = vsel %vm257, %v439, 0
      %v455 = vsel %vm261, %v450, 0
      %v457 = vsel %vm261, %v451, 0
      %459 = vmatprep.subr.mxu0 0.0
      %460 = vmatpush1.msra.mxu0 0.0
      %461 = vmatprep.subr.mxu0 0.0
      %462 = vmatpush1.msra.mxu0 0.0
      %463 = vmatprep.subr.mxu0 0.0
      %464 = vmatpush1.msra.mxu0 0.0
      %465 = vmatprep.subr.mxu0 0.0
      %466 = vmatpush1.msra.mxu0 0.0
      %467 = vmatprep.subr.mxu0 0.0
      %468 = vmatpush1.msra.mxu0 0.0
      %469 = vmatprep.subr.mxu0 0.0
      %470 = vmatpush1.msra.mxu0 0.0
      %471 = vmatprep.subr.mxu0 0.0
      %472 = vmatpush1.msra.mxu0 0.0
      %473 = vmatprep.subr.mxu0 0.0
      %474 = vmatpush1.msra.mxu0 0.0
      %475 = vmatprep.subr.mxu0 0.0
      %476 = vmatpush1.msra.mxu0 0.0
      %477 = vmatprep.subr.mxu0 0.0
      %478 = vmatpush1.msra.mxu0 0.0
      %479 = vmatprep.subr.mxu0 0.0
      %480 = vmatpush1.msra.mxu0 0.0
      %481 = vmatprep.subr.mxu0 0.0
      %482 = vmatpush1.msra.mxu0 0.0
      %483 = vmatprep.subr.mxu0 0.0
      %484 = vmatpush1.msra.mxu0 0.0
      %485 = vmatprep.subr.mxu0 0.0
      %486 = vmatpush1.msra.mxu0 0.0
      %487 = vmatprep.subr.mxu0 0.0
      %488 = vmatpush1.msra.mxu0 0.0
      %489 = vmatprep.subr.mxu0 %v457
      %490 = vmatpush1.msra.mxu0 %v455
      %491 = vmatprep.subr.mxu0 0.0
      %492 = vmatpush2.msra.mxu0 0.0
      %493 = vmatprep.subr.mxu0 0.0
      %494 = vmatpush2.msra.mxu0 0.0
      %495 = vmatprep.subr.mxu0 0.0
      %496 = vmatpush2.msra.mxu0 0.0
      %497 = vmatprep.subr.mxu0 0.0
      %498 = vmatpush2.msra.mxu0 0.0
      %499 = vmatprep.subr.mxu0 0.0
      %500 = vmatpush2.msra.mxu0 0.0
      %501 = vmatprep.subr.mxu0 0.0
      %502 = vmatpush2.msra.mxu0 0.0
      %503 = vmatprep.subr.mxu0 0.0
      %504 = vmatpush2.msra.mxu0 0.0
      %505 = vmatprep.subr.mxu0 0.0
      %506 = vmatpush2.msra.mxu0 0.0
      %507 = vmatprep.subr.mxu0 0.0
      %508 = vmatpush2.msra.mxu0 0.0
      %509 = vmatprep.subr.mxu0 0.0
      %510 = vmatpush2.msra.mxu0 0.0
      %511 = vmatprep.subr.mxu0 0.0
      %512 = vmatpush2.msra.mxu0 0.0
      %513 = vmatprep.subr.mxu0 0.0
      %514 = vmatpush2.msra.mxu0 0.0
      %515 = vmatprep.subr.mxu0 0.0
      %516 = vmatpush2.msra.mxu0 0.0
      %517 = vmatprep.subr.mxu0 0.0
      %518 = vmatpush2.msra.mxu0 0.0
      %519 = vmatprep.subr.mxu0 0.0
      %520 = vmatpush2.msra.mxu0 0.0
      %521 = vmatprep.subr.mxu0 0.0
      %522 = vmatpush2.msra.mxu0 0.0
      %523 = vmatprep.mubr.f32.mxu0 0.0
      %524 = vmatmul.mubr.f32.gmra.mxu0 %v453
      %v525 = vpop.f32.mrf.mxu0
      %v526 = vadd.f32 0.0, %v525
      %v527 = vpop.f32.mrf.mxu0
      %v528 = vadd.f32 0.0, %v527
      %529 = vdwg.mxu0
      %v530 = vadd.f32 %v413, %v526
      %v531 = vadd.f32 %v415, %v528
      %532 = vrot.lane.b32.xlu0 %v239, 16
      %v533 = vpop.permute.xlu0 %532
      %v534 = vrot.slane %v533, 4
      %vm535 = vcmask 130048
      %v536 = vsel %vm535, %v534, %v533
      %v539 = vmul.f32 %v227, %v536
      %v540 = vmul.f32 %v228, %v534
      %s541 = scalar_lea.vmem %s1, 24
      %v542 = vld [vmem:[%s541] sm:$0xff]
      %v545 = vcombine.high %v539, %v539
      %546 = vrot.lane.b32.xlu0 %v539, 112
      %v547 = vpop.permute.xlu0 %546
      %548 = vrot.lane.b32.xlu0 %v545, 112
      %v549 = vpop.permute.xlu0 %548
      %550 = vrot.lane.b32.xlu0 %v540, 112
      %v551 = vpop.permute.xlu0 %550
      %vm552 = vcmask 916480
      %v553 = vsel %vm552, %v547, %v549
      %v554 = vsel %vm552, %v549, %v551
      %v556 = vsel %vm257, %v542, 0
      %v558 = vsel %vm261, %v553, 0
      %v560 = vsel %vm261, %v554, 0
      %562 = vmatprep.subr.mxu0 0.0
      %563 = vmatpush1.msra.mxu0 0.0
      %564 = vmatprep.subr.mxu0 0.0
      %565 = vmatpush1.msra.mxu0 0.0
      %566 = vmatprep.subr.mxu0 0.0
      %567 = vmatpush1.msra.mxu0 0.0
      %568 = vmatprep.subr.mxu0 0.0
      %569 = vmatpush1.msra.mxu0 0.0
      %570 = vmatprep.subr.mxu0 0.0
      %571 = vmatpush1.msra.mxu0 0.0
      %572 = vmatprep.subr.mxu0 0.0
      %573 = vmatpush1.msra.mxu0 0.0
      %574 = vmatprep.subr.mxu0 0.0
      %575 = vmatpush1.msra.mxu0 0.0
      %576 = vmatprep.subr.mxu0 0.0
      %577 = vmatpush1.msra.mxu0 0.0
      %578 = vmatprep.subr.mxu0 0.0
      %579 = vmatpush1.msra.mxu0 0.0
      %580 = vmatprep.subr.mxu0 0.0
      %581 = vmatpush1.msra.mxu0 0.0
      %582 = vmatprep.subr.mxu0 0.0
      %583 = vmatpush1.msra.mxu0 0.0
      %584 = vmatprep.subr.mxu0 0.0
      %585 = vmatpush1.msra.mxu0 0.0
      %586 = vmatprep.subr.mxu0 0.0
      %587 = vmatpush1.msra.mxu0 0.0
      %588 = vmatprep.subr.mxu0 0.0
      %589 = vmatpush1.msra.mxu0 0.0
      %590 = vmatprep.subr.mxu0 0.0
      %591 = vmatpush1.msra.mxu0 0.0
      %592 = vmatprep.subr.mxu0 %v560
      %593 = vmatpush1.msra.mxu0 %v558
      %594 = vmatprep.subr.mxu0 0.0
      %595 = vmatpush2.msra.mxu0 0.0
      %596 = vmatprep.subr.mxu0 0.0
      %597 = vmatpush2.msra.mxu0 0.0
      %598 = vmatprep.subr.mxu0 0.0
      %599 = vmatpush2.msra.mxu0 0.0
      %600 = vmatprep.subr.mxu0 0.0
      %601 = vmatpush2.msra.mxu0 0.0
      %602 = vmatprep.subr.mxu0 0.0
      %603 = vmatpush2.msra.mxu0 0.0
      %604 = vmatprep.subr.mxu0 0.0
      %605 = vmatpush2.msra.mxu0 0.0
      %606 = vmatprep.subr.mxu0 0.0
      %607 = vmatpush2.msra.mxu0 0.0
      %608 = vmatprep.subr.mxu0 0.0
      %609 = vmatpush2.msra.mxu0 0.0
      %610 = vmatprep.subr.mxu0 0.0
      %611 = vmatpush2.msra.mxu0 0.0
      %612 = vmatprep.subr.mxu0 0.0
      %613 = vmatpush2.msra.mxu0 0.0
      %614 = vmatprep.subr.mxu0 0.0
      %615 = vmatpush2.msra.mxu0 0.0
      %616 = vmatprep.subr.mxu0 0.0
      %617 = vmatpush2.msra.mxu0 0.0
      %618 = vmatprep.subr.mxu0 0.0
      %619 = vmatpush2.msra.mxu0 0.0
      %620 = vmatprep.subr.mxu0 0.0
      %621 = vmatpush2.msra.mxu0 0.0
      %622 = vmatprep.subr.mxu0 0.0
      %623 = vmatpush2.msra.mxu0 0.0
      %624 = vmatprep.subr.mxu0 0.0
      %625 = vmatpush2.msra.mxu0 0.0
      %626 = vmatprep.mubr.f32.mxu0 0.0
      %627 = vmatmul.mubr.f32.gmra.mxu0 %v556
      %v628 = vpop.f32.mrf.mxu0
      %v629 = vadd.f32 0.0, %v628
      %v630 = vpop.f32.mrf.mxu0
      %v631 = vadd.f32 0.0, %v630
      %632 = vdwg.mxu0
      %v633 = vadd.f32 %v530, %v629
      %v634 = vadd.f32 %v531, %v631
      %s635 = scalar_lea.vmem %s1, 32
      %v636 = vld [vmem:[%s635] sm:$0xff]
      %637 = vrot.lane.b32.xlu0 %v227, 111
      %v638 = vpop.permute.xlu0 %637
      %639 = vrot.lane.b32.xlu0 %v247, 111
      %v640 = vpop.permute.xlu0 %639
      %641 = vrot.lane.b32.xlu0 %v228, 111
      %v642 = vpop.permute.xlu0 %641
      %vm643 = vcmask 908288
      %v644 = vsel %vm643, %v638, %v640
      %v645 = vsel %vm643, %v640, %v642
      %v647 = vsel %vm257, %v636, 0
      %v649 = vsel %vm261, %v644, 0
      %v651 = vsel %vm261, %v645, 0
      %653 = vmatprep.subr.mxu0 0.0
      %654 = vmatpush1.msra.mxu0 0.0
      %655 = vmatprep.subr.mxu0 0.0
      %656 = vmatpush1.msra.mxu0 0.0
      %657 = vmatprep.subr.mxu0 0.0
      %658 = vmatpush1.msra.mxu0 0.0
      %659 = vmatprep.subr.mxu0 0.0
      %660 = vmatpush1.msra.mxu0 0.0
      %661 = vmatprep.subr.mxu0 0.0
      %662 = vmatpush1.msra.mxu0 0.0
      %663 = vmatprep.subr.mxu0 0.0
      %664 = vmatpush1.msra.mxu0 0.0
      %665 = vmatprep.subr.mxu0 0.0
      %666 = vmatpush1.msra.mxu0 0.0
      %667 = vmatprep.subr.mxu0 0.0
      %668 = vmatpush1.msra.mxu0 0.0
      %669 = vmatprep.subr.mxu0 0.0
      %670 = vmatpush1.msra.mxu0 0.0
      %671 = vmatprep.subr.mxu0 0.0
      %672 = vmatpush1.msra.mxu0 0.0
      %673 = vmatprep.subr.mxu0 0.0
      %674 = vmatpush1.msra.mxu0 0.0
      %675 = vmatprep.subr.mxu0 0.0
      %676 = vmatpush1.msra.mxu0 0.0
      %677 = vmatprep.subr.mxu0 0.0
      %678 = vmatpush1.msra.mxu0 0.0
      %679 = vmatprep.subr.mxu0 0.0
      %680 = vmatpush1.msra.mxu0 0.0
      %681 = vmatprep.subr.mxu0 0.0
      %682 = vmatpush1.msra.mxu0 0.0
      %683 = vmatprep.subr.mxu0 %v651
      %684 = vmatpush1.msra.mxu0 %v649
      %685 = vmatprep.subr.mxu0 0.0
      %686 = vmatpush2.msra.mxu0 0.0
      %687 = vmatprep.subr.mxu0 0.0
      %688 = vmatpush2.msra.mxu0 0.0
      %689 = vmatprep.subr.mxu0 0.0
      %690 = vmatpush2.msra.mxu0 0.0
      %691 = vmatprep.subr.mxu0 0.0
      %692 = vmatpush2.msra.mxu0 0.0
      %693 = vmatprep.subr.mxu0 0.0
      %694 = vmatpush2.msra.mxu0 0.0
      %695 = vmatprep.subr.mxu0 0.0
      %696 = vmatpush2.msra.mxu0 0.0
      %697 = vmatprep.subr.mxu0 0.0
      %698 = vmatpush2.msra.mxu0 0.0
      %699 = vmatprep.subr.mxu0 0.0
      %700 = vmatpush2.msra.mxu0 0.0
      %701 = vmatprep.subr.mxu0 0.0
      %702 = vmatpush2.msra.mxu0 0.0
      %703 = vmatprep.subr.mxu0 0.0
      %704 = vmatpush2.msra.mxu0 0.0
      %705 = vmatprep.subr.mxu0 0.0
      %706 = vmatpush2.msra.mxu0 0.0
      %707 = vmatprep.subr.mxu0 0.0
      %708 = vmatpush2.msra.mxu0 0.0
      %709 = vmatprep.subr.mxu0 0.0
      %710 = vmatpush2.msra.mxu0 0.0
      %711 = vmatprep.subr.mxu0 0.0
      %712 = vmatpush2.msra.mxu0 0.0
      %713 = vmatprep.subr.mxu0 0.0
      %714 = vmatpush2.msra.mxu0 0.0
      %715 = vmatprep.subr.mxu0 0.0
      %716 = vmatpush2.msra.mxu0 0.0
      %717 = vmatprep.mubr.f32.mxu0 0.0
      %718 = vmatmul.mubr.f32.gmra.mxu0 %v647
      %v719 = vpop.f32.mrf.mxu0
      %v720 = vadd.f32 0.0, %v719
      %v721 = vpop.f32.mrf.mxu0
      %v722 = vadd.f32 0.0, %v721
      %723 = vdwg.mxu0
      %v724 = vadd.f32 %v633, %v720
      %v725 = vadd.f32 %v634, %v722
      %726 = vrot.lane.b32.xlu0 %v428, 18
      %v727 = vpop.permute.xlu0 %726
      %v728 = vrot.slane %v727, 4
      %vm729 = vcmask 146432
      %v730 = vsel %vm729, %v728, %v727
      %v733 = vmul.f32 %v227, %v730
      %v734 = vmul.f32 %v228, %v728
      %s735 = scalar_lea.vmem %s1, 40
      %v736 = vld [vmem:[%s735] sm:$0xff]
      %v739 = vcombine.high %v733, %v733
      %740 = vrot.lane.b32.xlu0 %v733, 110
      %v741 = vpop.permute.xlu0 %740
      %742 = vrot.lane.b32.xlu0 %v739, 110
      %v743 = vpop.permute.xlu0 %742
      %744 = vrot.lane.b32.xlu0 %v734, 110
      %v745 = vpop.permute.xlu0 %744
      %vm746 = vcmask 900096
      %v747 = vsel %vm746, %v741, %v743
      %v748 = vsel %vm746, %v743, %v745
      %v750 = vsel %vm257, %v736, 0
      %v752 = vsel %vm261, %v747, 0
      %v754 = vsel %vm261, %v748, 0
      %756 = vmatprep.subr.mxu0 0.0
      %757 = vmatpush1.msra.mxu0 0.0
      %758 = vmatprep.subr.mxu0 0.0
      %759 = vmatpush1.msra.mxu0 0.0
      %760 = vmatprep.subr.mxu0 0.0
      %761 = vmatpush1.msra.mxu0 0.0
      %762 = vmatprep.subr.mxu0 0.0
      %763 = vmatpush1.msra.mxu0 0.0
      %764 = vmatprep.subr.mxu0 0.0
      %765 = vmatpush1.msra.mxu0 0.0
      %766 = vmatprep.subr.mxu0 0.0
      %767 = vmatpush1.msra.mxu0 0.0
      %768 = vmatprep.subr.mxu0 0.0
      %769 = vmatpush1.msra.mxu0 0.0
      %770 = vmatprep.subr.mxu0 0.0
      %771 = vmatpush1.msra.mxu0 0.0
      %772 = vmatprep.subr.mxu0 0.0
      %773 = vmatpush1.msra.mxu0 0.0
      %774 = vmatprep.subr.mxu0 0.0
      %775 = vmatpush1.msra.mxu0 0.0
      %776 = vmatprep.subr.mxu0 0.0
      %777 = vmatpush1.msra.mxu0 0.0
      %778 = vmatprep.subr.mxu0 0.0
      %779 = vmatpush1.msra.mxu0 0.0
      %780 = vmatprep.subr.mxu0 0.0
      %781 = vmatpush1.msra.mxu0 0.0
      %782 = vmatprep.subr.mxu0 0.0
      %783 = vmatpush1.msra.mxu0 0.0
      %784 = vmatprep.subr.mxu0 0.0
      %785 = vmatpush1.msra.mxu0 0.0
      %786 = vmatprep.subr.mxu0 %v754
      %787 = vmatpush1.msra.mxu0 %v752
      %788 = vmatprep.subr.mxu0 0.0
      %789 = vmatpush2.msra.mxu0 0.0
      %790 = vmatprep.subr.mxu0 0.0
      %791 = vmatpush2.msra.mxu0 0.0
      %792 = vmatprep.subr.mxu0 0.0
      %793 = vmatpush2.msra.mxu0 0.0
      %794 = vmatprep.subr.mxu0 0.0
      %795 = vmatpush2.msra.mxu0 0.0
      %796 = vmatprep.subr.mxu0 0.0
      %797 = vmatpush2.msra.mxu0 0.0
      %798 = vmatprep.subr.mxu0 0.0
      %799 = vmatpush2.msra.mxu0 0.0
      %800 = vmatprep.subr.mxu0 0.0
      %801 = vmatpush2.msra.mxu0 0.0
      %802 = vmatprep.subr.mxu0 0.0
      %803 = vmatpush2.msra.mxu0 0.0
      %804 = vmatprep.subr.mxu0 0.0
      %805 = vmatpush2.msra.mxu0 0.0
      %806 = vmatprep.subr.mxu0 0.0
      %807 = vmatpush2.msra.mxu0 0.0
      %808 = vmatprep.subr.mxu0 0.0
      %809 = vmatpush2.msra.mxu0 0.0
      %810 = vmatprep.subr.mxu0 0.0
      %811 = vmatpush2.msra.mxu0 0.0
      %812 = vmatprep.subr.mxu0 0.0
      %813 = vmatpush2.msra.mxu0 0.0
      %814 = vmatprep.subr.mxu0 0.0
      %815 = vmatpush2.msra.mxu0 0.0
      %816 = vmatprep.subr.mxu0 0.0
      %817 = vmatpush2.msra.mxu0 0.0
      %818 = vmatprep.subr.mxu0 0.0
      %819 = vmatpush2.msra.mxu0 0.0
      %820 = vmatprep.mubr.f32.mxu0 0.0
      %821 = vmatmul.mubr.f32.gmra.mxu0 %v750
      %v822 = vpop.f32.mrf.mxu0
      %v823 = vadd.f32 0.0, %v822
      %v824 = vpop.f32.mrf.mxu0
      %v825 = vadd.f32 0.0, %v824
      %826 = vdwg.mxu0
      %v827 = vadd.f32 %v724, %v823
      %v828 = vadd.f32 %v725, %v825
      %829 = vrot.lane.b32.xlu0 %v239, 32
      %v830 = vpop.permute.xlu0 %829
      %v831 = vrot.slane %v830, 4
      %vm832 = vcmask 261120
      %v833 = vsel %vm832, %v831, %v830
      %v836 = vmul.f32 %v227, %v833
      %v837 = vmul.f32 %v228, %v831
      %s838 = scalar_lea.vmem %s1, 48
      %v839 = vld [vmem:[%s838] sm:$0xff]
      %v842 = vcombine.high %v836, %v836
      %843 = vrot.lane.b32.xlu0 %v836, 96
      %v844 = vpop.permute.xlu0 %843
      %845 = vrot.lane.b32.xlu0 %v842, 96
      %v846 = vpop.permute.xlu0 %845
      %847 = vrot.lane.b32.xlu0 %v837, 96
      %v848 = vpop.permute.xlu0 %847
      %vm849 = vcmask 785408
      %v850 = vsel %vm849, %v844, %v846
      %v851 = vsel %vm849, %v846, %v848
      %v853 = vsel %vm257, %v839, 0
      %v855 = vsel %vm261, %v850, 0
      %v857 = vsel %vm261, %v851, 0
      %859 = vmatprep.subr.mxu0 0.0
      %860 = vmatpush1.msra.mxu0 0.0
      %861 = vmatprep.subr.mxu0 0.0
      %862 = vmatpush1.msra.mxu0 0.0
      %863 = vmatprep.subr.mxu0 0.0
      %864 = vmatpush1.msra.mxu0 0.0
      %865 = vmatprep.subr.mxu0 0.0
      %866 = vmatpush1.msra.mxu0 0.0
      %867 = vmatprep.subr.mxu0 0.0
      %868 = vmatpush1.msra.mxu0 0.0
      %869 = vmatprep.subr.mxu0 0.0
      %870 = vmatpush1.msra.mxu0 0.0
      %871 = vmatprep.subr.mxu0 0.0
      %872 = vmatpush1.msra.mxu0 0.0
      %873 = vmatprep.subr.mxu0 0.0
      %874 = vmatpush1.msra.mxu0 0.0
      %875 = vmatprep.subr.mxu0 0.0
      %876 = vmatpush1.msra.mxu0 0.0
      %877 = vmatprep.subr.mxu0 0.0
      %878 = vmatpush1.msra.mxu0 0.0
      %879 = vmatprep.subr.mxu0 0.0
      %880 = vmatpush1.msra.mxu0 0.0
      %881 = vmatprep.subr.mxu0 0.0
      %882 = vmatpush1.msra.mxu0 0.0
      %883 = vmatprep.subr.mxu0 0.0
      %884 = vmatpush1.msra.mxu0 0.0
      %885 = vmatprep.subr.mxu0 0.0
      %886 = vmatpush1.msra.mxu0 0.0
      %887 = vmatprep.subr.mxu0 0.0
      %888 = vmatpush1.msra.mxu0 0.0
      %889 = vmatprep.subr.mxu0 %v857
      %890 = vmatpush1.msra.mxu0 %v855
      %891 = vmatprep.subr.mxu0 0.0
      %892 = vmatpush2.msra.mxu0 0.0
      %893 = vmatprep.subr.mxu0 0.0
      %894 = vmatpush2.msra.mxu0 0.0
      %895 = vmatprep.subr.mxu0 0.0
      %896 = vmatpush2.msra.mxu0 0.0
      %897 = vmatprep.subr.mxu0 0.0
      %898 = vmatpush2.msra.mxu0 0.0
      %899 = vmatprep.subr.mxu0 0.0
      %900 = vmatpush2.msra.mxu0 0.0
      %901 = vmatprep.subr.mxu0 0.0
      %902 = vmatpush2.msra.mxu0 0.0
      %903 = vmatprep.subr.mxu0 0.0
      %904 = vmatpush2.msra.mxu0 0.0
      %905 = vmatprep.subr.mxu0 0.0
      %906 = vmatpush2.msra.mxu0 0.0
      %907 = vmatprep.subr.mxu0 0.0
      %908 = vmatpush2.msra.mxu0 0.0
      %909 = vmatprep.subr.mxu0 0.0
      %910 = vmatpush2.msra.mxu0 0.0
      %911 = vmatprep.subr.mxu0 0.0
      %912 = vmatpush2.msra.mxu0 0.0
      %913 = vmatprep.subr.mxu0 0.0
      %914 = vmatpush2.msra.mxu0 0.0
      %915 = vmatprep.subr.mxu0 0.0
      %916 = vmatpush2.msra.mxu0 0.0
      %917 = vmatprep.subr.mxu0 0.0
      %918 = vmatpush2.msra.mxu0 0.0
      %919 = vmatprep.subr.mxu0 0.0
      %920 = vmatpush2.msra.mxu0 0.0
      %921 = vmatprep.subr.mxu0 0.0
      %922 = vmatpush2.msra.mxu0 0.0
      %923 = vmatprep.mubr.f32.mxu0 0.0
      %924 = vmatmul.mubr.f32.gmra.mxu0 %v853
      %v925 = vpop.f32.mrf.mxu0
      %v926 = vadd.f32 0.0, %v925
      %v927 = vpop.f32.mrf.mxu0
      %v928 = vadd.f32 0.0, %v927
      %929 = vdwg.mxu0
      %v930 = vadd.f32 %v827, %v926
      %v931 = vadd.f32 %v828, %v928
      %s932 = scalar_lea.vmem %s1, 56
      %v933 = vld [vmem:[%s932] sm:$0xff]
      %934 = vrot.lane.b32.xlu0 %v227, 95
      %v935 = vpop.permute.xlu0 %934
      %936 = vrot.lane.b32.xlu0 %v247, 95
      %v937 = vpop.permute.xlu0 %936
      %938 = vrot.lane.b32.xlu0 %v228, 95
      %v939 = vpop.permute.xlu0 %938
      %vm940 = vcmask 777216
      %v941 = vsel %vm940, %v935, %v937
      %v942 = vsel %vm940, %v937, %v939
      %v944 = vsel %vm257, %v933, 0
      %v946 = vsel %vm261, %v941, 0
      %v948 = vsel %vm261, %v942, 0
      %950 = vmatprep.subr.mxu0 0.0
      %951 = vmatpush1.msra.mxu0 0.0
      %952 = vmatprep.subr.mxu0 0.0
      %953 = vmatpush1.msra.mxu0 0.0
      %954 = vmatprep.subr.mxu0 0.0
      %955 = vmatpush1.msra.mxu0 0.0
      %956 = vmatprep.subr.mxu0 0.0
      %957 = vmatpush1.msra.mxu0 0.0
      %958 = vmatprep.subr.mxu0 0.0
      %959 = vmatpush1.msra.mxu0 0.0
      %960 = vmatprep.subr.mxu0 0.0
      %961 = vmatpush1.msra.mxu0 0.0
      %962 = vmatprep.subr.mxu0 0.0
      %963 = vmatpush1.msra.mxu0 0.0
      %964 = vmatprep.subr.mxu0 0.0
      %965 = vmatpush1.msra.mxu0 0.0
      %966 = vmatprep.subr.mxu0 0.0
      %967 = vmatpush1.msra.mxu0 0.0
      %968 = vmatprep.subr.mxu0 0.0
      %969 = vmatpush1.msra.mxu0 0.0
      %970 = vmatprep.subr.mxu0 0.0
      %971 = vmatpush1.msra.mxu0 0.0
      %972 = vmatprep.subr.mxu0 0.0
      %973 = vmatpush1.msra.mxu0 0.0
      %974 = vmatprep.subr.mxu0 0.0
      %975 = vmatpush1.msra.mxu0 0.0
      %976 = vmatprep.subr.mxu0 0.0
      %977 = vmatpush1.msra.mxu0 0.0
      %978 = vmatprep.subr.mxu0 0.0
      %979 = vmatpush1.msra.mxu0 0.0
      %980 = vmatprep.subr.mxu0 %v948
      %981 = vmatpush1.msra.mxu0 %v946
      %982 = vmatprep.subr.mxu0 0.0
      %983 = vmatpush2.msra.mxu0 0.0
      %984 = vmatprep.subr.mxu0 0.0
      %985 = vmatpush2.msra.mxu0 0.0
      %986 = vmatprep.subr.mxu0 0.0
      %987 = vmatpush2.msra.mxu0 0.0
      %988 = vmatprep.subr.mxu0 0.0
      %989 = vmatpush2.msra.mxu0 0.0
      %990 = vmatprep.subr.mxu0 0.0
      %991 = vmatpush2.msra.mxu0 0.0
      %992 = vmatprep.subr.mxu0 0.0
      %993 = vmatpush2.msra.mxu0 0.0
      %994 = vmatprep.subr.mxu0 0.0
      %995 = vmatpush2.msra.mxu0 0.0
      %996 = vmatprep.subr.mxu0 0.0
      %997 = vmatpush2.msra.mxu0 0.0
      %998 = vmatprep.subr.mxu0 0.0
      %999 = vmatpush2.msra.mxu0 0.0
      %1000 = vmatprep.subr.mxu0 0.0
      %1001 = vmatpush2.msra.mxu0 0.0
      %1002 = vmatprep.subr.mxu0 0.0
      %1003 = vmatpush2.msra.mxu0 0.0
      %1004 = vmatprep.subr.mxu0 0.0
      %1005 = vmatpush2.msra.mxu0 0.0
      %1006 = vmatprep.subr.mxu0 0.0
      %1007 = vmatpush2.msra.mxu0 0.0
      %1008 = vmatprep.subr.mxu0 0.0
      %1009 = vmatpush2.msra.mxu0 0.0
      %1010 = vmatprep.subr.mxu0 0.0
      %1011 = vmatpush2.msra.mxu0 0.0
      %1012 = vmatprep.subr.mxu0 0.0
      %1013 = vmatpush2.msra.mxu0 0.0
      %1014 = vmatprep.mubr.f32.mxu0 0.0
      %1015 = vmatmul.mubr.f32.gmra.mxu0 %v944
      %v1016 = vpop.f32.mrf.mxu0
      %v1017 = vadd.f32 0.0, %v1016
      %v1018 = vpop.f32.mrf.mxu0
      %v1019 = vadd.f32 0.0, %v1018
      %1020 = vdwg.mxu0
      %v1021 = vadd.f32 %v930, %v1017
      %v1022 = vadd.f32 %v931, %v1019
      %1023 = vrot.lane.b32.xlu0 %v428, 34
      %v1024 = vpop.permute.xlu0 %1023
      %v1025 = vrot.slane %v1024, 4
      %vm1026 = vcmask 277504
      %v1027 = vsel %vm1026, %v1025, %v1024
      %v1030 = vmul.f32 %v227, %v1027
      %v1031 = vmul.f32 %v228, %v1025
      %s1032 = scalar_lea.vmem %s1, 64
      %v1033 = vld [vmem:[%s1032] sm:$0xff]
      %v1036 = vcombine.high %v1030, %v1030
      %1037 = vrot.lane.b32.xlu0 %v1030, 94
      %v1038 = vpop.permute.xlu0 %1037
      %1039 = vrot.lane.b32.xlu0 %v1036, 94
      %v1040 = vpop.permute.xlu0 %1039
      %1041 = vrot.lane.b32.xlu0 %v1031, 94
      %v1042 = vpop.permute.xlu0 %1041
      %vm1043 = vcmask 769024
      %v1044 = vsel %vm1043, %v1038, %v1040
      %v1045 = vsel %vm1043, %v1040, %v1042
      %v1047 = vsel %vm257, %v1033, 0
      %v1049 = vsel %vm261, %v1044, 0
      %v1051 = vsel %vm261, %v1045, 0
      %1053 = vmatprep.subr.mxu0 0.0
      %1054 = vmatpush1.msra.mxu0 0.0
      %1055 = vmatprep.subr.mxu0 0.0
      %1056 = vmatpush1.msra.mxu0 0.0
      %1057 = vmatprep.subr.mxu0 0.0
      %1058 = vmatpush1.msra.mxu0 0.0
      %1059 = vmatprep.subr.mxu0 0.0
      %1060 = vmatpush1.msra.mxu0 0.0
      %1061 = vmatprep.subr.mxu0 0.0
      %1062 = vmatpush1.msra.mxu0 0.0
      %1063 = vmatprep.subr.mxu0 0.0
      %1064 = vmatpush1.msra.mxu0 0.0
      %1065 = vmatprep.subr.mxu0 0.0
      %1066 = vmatpush1.msra.mxu0 0.0
      %1067 = vmatprep.subr.mxu0 0.0
      %1068 = vmatpush1.msra.mxu0 0.0
      %1069 = vmatprep.subr.mxu0 0.0
      %1070 = vmatpush1.msra.mxu0 0.0
      %1071 = vmatprep.subr.mxu0 0.0
      %1072 = vmatpush1.msra.mxu0 0.0
      %1073 = vmatprep.subr.mxu0 0.0
      %1074 = vmatpush1.msra.mxu0 0.0
      %1075 = vmatprep.subr.mxu0 0.0
      %1076 = vmatpush1.msra.mxu0 0.0
      %1077 = vmatprep.subr.mxu0 0.0
      %1078 = vmatpush1.msra.mxu0 0.0
      %1079 = vmatprep.subr.mxu0 0.0
      %1080 = vmatpush1.msra.mxu0 0.0
      %1081 = vmatprep.subr.mxu0 0.0
      %1082 = vmatpush1.msra.mxu0 0.0
      %1083 = vmatprep.subr.mxu0 %v1051
      %1084 = vmatpush1.msra.mxu0 %v1049
      %1085 = vmatprep.subr.mxu0 0.0
      %1086 = vmatpush2.msra.mxu0 0.0
      %1087 = vmatprep.subr.mxu0 0.0
      %1088 = vmatpush2.msra.mxu0 0.0
      %1089 = vmatprep.subr.mxu0 0.0
      %1090 = vmatpush2.msra.mxu0 0.0
      %1091 = vmatprep.subr.mxu0 0.0
      %1092 = vmatpush2.msra.mxu0 0.0
      %1093 = vmatprep.subr.mxu0 0.0
      %1094 = vmatpush2.msra.mxu0 0.0
      %1095 = vmatprep.subr.mxu0 0.0
      %1096 = vmatpush2.msra.mxu0 0.0
      %1097 = vmatprep.subr.mxu0 0.0
      %1098 = vmatpush2.msra.mxu0 0.0
      %1099 = vmatprep.subr.mxu0 0.0
      %1100 = vmatpush2.msra.mxu0 0.0
      %1101 = vmatprep.subr.mxu0 0.0
      %1102 = vmatpush2.msra.mxu0 0.0
      %1103 = vmatprep.subr.mxu0 0.0
      %1104 = vmatpush2.msra.mxu0 0.0
      %1105 = vmatprep.subr.mxu0 0.0
      %1106 = vmatpush2.msra.mxu0 0.0
      %1107 = vmatprep.subr.mxu0 0.0
      %1108 = vmatpush2.msra.mxu0 0.0
      %1109 = vmatprep.subr.mxu0 0.0
      %1110 = vmatpush2.msra.mxu0 0.0
      %1111 = vmatprep.subr.mxu0 0.0
      %1112 = vmatpush2.msra.mxu0 0.0
      %1113 = vmatprep.subr.mxu0 0.0
      %1114 = vmatpush2.msra.mxu0 0.0
      %1115 = vmatprep.subr.mxu0 0.0
      %1116 = vmatpush2.msra.mxu0 0.0
      %1117 = vmatprep.mubr.f32.mxu0 0.0
      %1118 = vmatmul.mubr.f32.gmra.mxu0 %v1047
      %v1119 = vpop.f32.mrf.mxu0
      %v1120 = vadd.f32 0.0, %v1119
      %v1121 = vpop.f32.mrf.mxu0
      %v1122 = vadd.f32 0.0, %v1121
      %1123 = vdwg.mxu0
      %v1124 = vadd.f32 %v1021, %v1120
      %v1125 = vadd.f32 %v1022, %v1122
      %1126 = vst [vmem:[%s219] sm:$0xff] %v1124
      %1127 = vst [vmem:[%s219 + $0x8] sm:$0xff] %v1125
      %v1128 = vld [vmem:[%s4] sm:$0xff]
      %v1129 = vadd.f32 %v1124, %v1125
      %1130 = vadd.xlane.f32.xlu0 %v1129
      %v1131 = vpop.xlane.xlu0 %1130
      %v1132 = vadd.f32 %v1128, %v1131
      %vm1133 = vcmask 7168
      %1134 = vst.msk [vmem:[%s4] sm:$0xff] %vm1133, %v1132
      %v1135 = vld [vmem:[%s5] sm:$0xff]
      %v1136 = vmul.f32 %v1124, %v1124
      %v1137 = vmul.f32 %v1125, %v1125
      %v1138 = vadd.f32 %v1136, %v1137
      %1139 = vadd.xlane.f32.xlu0 %v1138
      %v1140 = vpop.xlane.xlu0 %1139
      %v1141 = vadd.f32 %v1135, %v1140
      %1142 = vst.msk [vmem:[%s5] sm:$0xff] %vm1133, %v1141
      %p1143 = scmp.lt.s32.totalorder %s17, 1
      %s1144 = scalar_select %p1143, %s17, 1
      %s1145 = smul.addr %s1144, 2
      %s1146 = smul.addr %s1145, 8
      %s1147 = scalar_lea.vmem %s3, %s1146
      // Predicated region
      $region37: #{encoder_block.2} parent=31 // pred_check
        %p1148 = pneg %p103
      $region38: #{encoder_block.2} parent=31 // pred_check_branch
        %1150 = sbr.rel (%p1148) target = $region40
      $region39: #{encoder_block.2} parent=31 // pred_region
        _
      $region40: #{encoder_block.2} parent=31 // pred_fallthru
        _
      // Predicated region
      $region41: #{encoder_block.2} parent=31 // pred_check
        %p1151 = pneg %p124
      $region42: #{encoder_block.2} parent=31 // pred_check_branch
        %1153 = sbr.rel (%p1151) target = $region44
      $region43: #{encoder_block.2} parent=31 // pred_region
        _
      $region44: #{encoder_block.2} parent=31 // pred_fallthru
        _
      // Predicated region
      $region45: #{encoder_block.2} parent=31 // pred_check
        %p1154 = pneg %p145
      $region46: #{encoder_block.2} parent=31 // pred_check_branch
        %1156 = sbr.rel (%p1154) target = $region48
      $region47: #{encoder_block.2} parent=31 // pred_region
        _
      $region48: #{encoder_block.2} parent=31 // pred_fallthru
        _
      // Predicated region
      $region49: #{encoder_block.2} parent=31 // pred_check
        %p1157 = pneg %p124
      $region50: #{encoder_block.2} parent=31 // pred_check_branch
        %1159 = sbr.rel (%p1157) target = $region52
      $region51: #{encoder_block.2} parent=31 // pred_region
        _
      $region52: #{encoder_block.2} parent=31 // pred_fallthru
        _
      // Predicated region
      $region53: #{encoder_block.2} parent=31 // pred_check
        %p1160 = pneg %p145
      $region54: #{encoder_block.2} parent=31 // pred_check_branch
        %1162 = sbr.rel (%p1160) target = $region56
      $region55: #{encoder_block.2} parent=31 // pred_region
        _
      $region56: #{encoder_block.2} parent=31 // pred_fallthru
        _
    $region32: #{encoder_block.2} parent=5 // pred_fallthru
      _
    %p1163 = scmp.le.s32.totalorder 2, %s12
    // Predicated region
    $region57: #{encoder_block.2} parent=5 // pred_check
      %p1164 = pneg %p1163
    $region58: #{encoder_block.2} parent=5 // pred_check_branch
      %1166 = sbr.rel (%p1164) target = $region60
    $region59: #{encoder_block.2} parent=5 // pred_region
      %s1167 = ssub.s32 %s12, 2
      // Predicated region
      $region61: #{encoder_block.2} parent=59 // pred_check
        %p1168 = pneg %p109
      $region62: #{encoder_block.2} parent=59 // pred_check_branch
        %1170 = sbr.rel (%p1168) target = $region64
      $region63: #{encoder_block.2} parent=59 // pred_region
        %p1171 = scmp.lt.s32.totalorder %s18, 1
        %s1172 = scalar_select %p1171, %s18, 1
        %s1173 = smul.addr %s1172, 2
        %s1174 = smul.addr %s1173, 8
        %s1175 = scalar_lea.vmem %s3, %s1174
      $region64: #{encoder_block.2} parent=59 // pred_fallthru
        _
    $region60: #{encoder_block.2} parent=5 // pred_fallthru
      _
  $region6: #{encoder_block.2} parent=0 // loop_footer
    %s16 = sadd.s32 1, %s12
  $region7: #{encoder_block.2} parent=0 // loop_footer_branch
    %11 = sbr.rel target = $region3
  $region8: #{encoder_block.2} parent=0 // loop_exit
    _

</llo_original>
